<compile_context>
chip_gen: v6e
topology: v6e:2x2x1
jax: 0.10.0
libtpu: 0.0.40
codegen_flags: <defaults>
</compile_context>

<pallas_src>
import functools
import math

import jax
import jax.numpy as jnp
from jax.experimental import pallas as pl
from jax.experimental.pallas import tpu as pltpu

_HIST = 8        # rows of pre-conv history carried across chunks (>= d_conv - 1)
_EXP_CAP = 64.0  # clamp for the exp(-cumsum) factor of the intra-chunk decay


def _silu_exact(x):
    # exact sigmoid on the conv path (feeds x/B/C and the cross-chunk state)
    return x / (1.0 + jnp.exp(-x))


def _silu_approx(x):
    # EUP approx reciprocal is fine for the output gate (does not feed the state)
    return x * pl.reciprocal(1.0 + jnp.exp(-x), approx=True)


def mamba2_kernel(u_ref, wz_ref, bz_ref, wxdt_ref, bxdt_ref,
                  convw_ref, convb_ref, dtbias_ref, alog_ref, hexp_ref,
                  normw_ref, normb_ref, wout_ref, bout_ref, o_ref,
                  state_ref, convbuf_ref,
                  *, cl, d_inner, d_state, d_conv, nheads, eps):
    f32 = jnp.float32
    bf16 = jnp.bfloat16
    conv_dim = d_inner + 2 * d_state
    chunk = pl.program_id(1)

    @pl.when(chunk == 0)
    def _init():
        state_ref[...] = jnp.zeros_like(state_ref)
        convbuf_ref[...] = jnp.zeros_like(convbuf_ref)

    def mm(a, b):  # (M,K)@(K,N) with f32 accumulation
        return jax.lax.dot_general(a, b, (((1,), (0,)), ((), ())),
                                   preferred_element_type=f32)

    u = u_ref[0].astype(bf16)                                      # (cl, d_model)

    # --------------- in_proj: z | (xBC ++ dt) — two lane-dense matmuls --------
    z = mm(u, wz_ref[...]) + bz_ref[...]                           # (cl, d_inner)
    xbcdt = mm(u, wxdt_ref[...]) + bxdt_ref[...]                   # (cl, conv_dim+H)
    xbc_pre = xbcdt[:, :conv_dim]
    dt_raw = xbcdt[:, conv_dim:]                                   # (cl, nheads)

    # ---- causal depthwise conv1d + SiLU over a persistent VMEM buffer --------
    convbuf_ref[_HIST:_HIST + cl, :] = xbc_pre
    conv = jnp.zeros((cl, conv_dim), f32)
    for k in range(d_conv):
        off = _HIST - (d_conv - 1) + k
        conv = conv + convbuf_ref[off:off + cl, :] * convw_ref[k:k + 1, :]
    conv = conv + convb_ref[...]
    convbuf_ref[0:_HIST, :] = xbc_pre[cl - _HIST:, :]   # pre-conv tail -> history
    xbc = _silu_exact(conv)

    x = xbc[:, :d_inner]                                           # (cl, d_inner)
    Bm = xbc[:, d_inner:d_inner + d_state]                         # (cl, d_state)
    Cm = xbc[:, d_inner + d_state:]                                # (cl, d_state)

    # ---------------- dt / per-head decays ----------------
    dtb = dt_raw + dtbias_ref[...]
    dt = jnp.maximum(dtb, 0.0) + jnp.log(1.0 + jnp.exp(-jnp.abs(dtb)))  # softplus
    A = -jnp.exp(alog_ref[...])                                    # (1, nheads)
    Adt = A * dt                                                   # (cl, nheads) <= 0

    # Inclusive cumsum over the chunk via one tiny triangular matmul (exact f32;
    # negligible cost, avoids unsupported cumsum / unaligned-shift lowering).
    row = jax.lax.broadcasted_iota(jnp.int32, (cl, cl), 0)
    col = jax.lax.broadcasted_iota(jnp.int32, (cl, cl), 1)
    T_incl = (row >= col).astype(f32)                              # lower-tri 0/1
    cumc = mm(T_incl, Adt)                                         # (cl, nheads)
    cum_last = cumc[cl - 1:cl, :]                                  # (1, nheads)

    # head -> lane expansion (0/1 selection matrix, bf16-exact, native MXU path)
    Eb = hexp_ref[...]                                             # (nheads, d_inner)

    def expand(v):                                                 # (cl,H)->(cl,d_inner)
        return mm(v.astype(bf16), Eb)

    dtE = expand(dt)
    exp_cumE = expand(jnp.exp(cumc))                               # decay to chunk start
    neg_cumE = expand(jnp.exp(jnp.minimum(-cumc, _EXP_CAP)))       # clamped inverse
    dsE = expand(jnp.exp(cum_last - cumc))                         # decay to chunk end

    Xdt = x * dtE                                                  # (cl, d_inner)
    Bb = Bm.astype(bf16)
    Cb = Cm.astype(bf16)

    # ---- inter-chunk contribution (uses state at chunk start) ----
    S_in = state_ref[...]                                          # (d_state, d_inner)
    Y_carry = mm(Cb, S_in.astype(bf16))                            # (cl, d_inner)

    # ---- state recurrence, lane-dense in d_inner ----
    st = jax.lax.dot_general(Bb, (Xdt * dsE).astype(bf16),
                             (((0,), (0,)), ((), ())),
                             preferred_element_type=f32)           # (d_state, d_inner)
    state_ref[...] = exp_cumE[cl - 1:cl, :] * S_in + st

    # ---- intra-chunk (diagonal) contribution: single lane-dense matmul ----
    CB = jax.lax.dot_general(Cb, Bb, (((1,), (1,)), ((), ())),
                             preferred_element_type=f32)           # (cl, cl)
    Mt = (CB * T_incl).astype(bf16)
    Y_intra = mm(Mt, (Xdt * neg_cumE).astype(bf16))                # (cl, d_inner)

    y = (Y_carry + Y_intra) * exp_cumE                             # (cl, d_inner)

    # ---------------- gated LayerNorm + out_proj ----------------
    yg = y * _silu_approx(z)
    mean = jnp.mean(yg, axis=-1, keepdims=True)
    cen = yg - mean
    var = jnp.mean(cen * cen, axis=-1, keepdims=True)
    yn = cen * jax.lax.rsqrt(var + eps)
    yn = yn * normw_ref[...] + normb_ref[...]

    out = mm(yn.astype(bf16), wout_ref[...]) + bout_ref[...]       # (cl, d_model)
    o_ref[0] = out.astype(o_ref.dtype)


def _pick_vmem_limit_bytes():
    """Generation-aware scoped-VMEM limit (v7x only has 64 MiB per TensorCore)."""
    try:
        kind = jax.devices()[0].device_kind.lower()
    except Exception:
        return 64 * 1024 * 1024
    if "v7" in kind:
        return 48 * 1024 * 1024
    if "v6" in kind or "v5 lite" in kind or "v5e" in kind:
        return 100 * 1024 * 1024
    return 64 * 1024 * 1024


def mamba2_forward(u, params, *, d_state, d_conv, expand, headdim, chunk_size):
    """Fused Mamba2 forward.

    Production guidance: chunk_size=128 on v5e, 256 on v6e/v7x; batch should be
    >= 2 (and even) so the "parallel" batch axis feeds both v7x TensorCores.
    Padded tail timesteps are processed but their outputs are truncated (the
    final SSD state is not returned, so this is harmless).
    """
    batch, L, d_model = u.shape
    d_inner = expand * d_model
    nheads = d_inner // headdim
    conv_dim = d_inner + 2 * d_state
    assert chunk_size >= _HIST and chunk_size % 8 == 0
    assert d_conv - 1 <= _HIST
    Lp = ((L + chunk_size - 1) // chunk_size) * chunk_size
    nchunks = Lp // chunk_size
    cl = chunk_size
    u_pad = jnp.pad(u, ((0, 0), (0, Lp - L), (0, 0)))

    bf16 = jnp.bfloat16
    in_w, in_b = params["in_w"], params["in_b"]
    wz = in_w[:, :d_inner].astype(bf16)
    wxdt = in_w[:, d_inner:].astype(bf16)          # xBC ++ dt column groups
    bz = in_b[:, :d_inner]
    bxdt = in_b[:, d_inner:]
    wout = params["out_w"].astype(bf16)

    # constant 0/1 head-expansion matrix (exact in bf16): E[h, i] = 1 iff lane i
    # belongs to head h
    head_of_lane = jnp.arange(d_inner, dtype=jnp.int32) // headdim
    E = (head_of_lane[None, :] ==
         jnp.arange(nheads, dtype=jnp.int32)[:, None]).astype(bf16)

    kern = functools.partial(
        mamba2_kernel, cl=cl, d_inner=d_inner, d_state=d_state, d_conv=d_conv,
        nheads=nheads, eps=1e-5)

    # TODO(synk): at production sizes single-buffer (pl.Buffered(1)) or stream
    # these constant operands from HBM so the bf16 weights fit v7x's 64 MiB VMEM.
    rep = lambda b, c: (0, 0)
    in_specs = [
        pl.BlockSpec((1, cl, d_model), lambda b, c: (b, c, 0)),   # u chunk
        pl.BlockSpec((d_model, d_inner), rep),                    # wz
        pl.BlockSpec((1, d_inner), rep),                          # bz
        pl.BlockSpec((d_model, conv_dim + nheads), rep),          # w_xbc_dt
        pl.BlockSpec((1, conv_dim + nheads), rep),                # b_xbc_dt
        pl.BlockSpec((d_conv, conv_dim), rep),                    # conv weight
        pl.BlockSpec((1, conv_dim), rep),                         # conv bias
        pl.BlockSpec((1, nheads), rep),                           # dt_bias
        pl.BlockSpec((1, nheads), rep),                           # A_log
        pl.BlockSpec((nheads, d_inner), rep),                     # E (bf16)
        pl.BlockSpec((1, d_inner), rep),                          # norm weight
        pl.BlockSpec((1, d_inner), rep),                          # norm bias
        pl.BlockSpec((d_inner, d_model), rep),                    # out_proj W
        pl.BlockSpec((1, d_model), rep),                          # out_proj b
    ]

    out = pl.pallas_call(
        kern,
        out_shape=jax.ShapeDtypeStruct((batch, Lp, d_model), u.dtype),
        grid=(batch, nchunks),
        in_specs=in_specs,
        out_specs=pl.BlockSpec((1, cl, d_model), lambda b, c: (b, c, 0)),
        scratch_shapes=[
            pltpu.VMEM((d_state, d_inner), jnp.float32),      # SSD inter-chunk state
            pltpu.VMEM((_HIST + cl, conv_dim), jnp.float32),  # conv history + chunk
        ],
        compiler_params=pltpu.CompilerParams(
            dimension_semantics=("parallel", "arbitrary"),
            vmem_limit_bytes=_pick_vmem_limit_bytes()),
    )(u_pad, wz, bz, wxdt, bxdt,
      params["conv_w"], params["conv_b"], params["dt_bias"], params["A_log"],
      E, params["norm_w"], params["norm_b"], wout, params["out_b"])
    return out[:, :L, :]


def init_params(key, *, d_model, d_state, d_conv, expand, headdim,
                dt_min=0.001, dt_max=0.1, dt_init_floor=1e-4,
                A_init_range=(1.0, 16.0)):
    d_inner = expand * d_model
    nheads = d_inner // headdim
    conv_dim = d_inner + 2 * d_state
    d_in_proj = 2 * d_inner + 2 * d_state + nheads
    ks = jax.random.split(key, 9)

    def unif(k, shape, bound):
        return jax.random.uniform(k, shape, jnp.float32, -bound, bound)

    b_in = 1.0 / math.sqrt(d_model)
    b_conv = 1.0 / math.sqrt(d_conv)
    b_out = 1.0 / math.sqrt(d_inner)

    dt = jnp.exp(jax.random.uniform(ks[4], (nheads,), jnp.float32)
                 * (math.log(dt_max) - math.log(dt_min)) + math.log(dt_min))
    dt = jnp.clip(dt, dt_init_floor)
    dt_bias = dt + jnp.log(-jnp.expm1(-dt))

    A = jax.random.uniform(ks[5], (nheads,), jnp.float32,
                           A_init_range[0], A_init_range[1])

    return {
        "in_w": unif(ks[0], (d_model, d_in_proj), b_in),
        "in_b": unif(ks[1], (1, d_in_proj), b_in),
        "conv_w": unif(ks[2], (d_conv, conv_dim), b_conv),
        "conv_b": unif(ks[3], (1, conv_dim), b_conv),
        "dt_bias": dt_bias.reshape(1, nheads),
        "A_log": jnp.log(A).reshape(1, nheads),
        "norm_w": jnp.ones((1, d_inner), jnp.float32),
        "norm_b": jnp.zeros((1, d_inner), jnp.float32),
        "out_w": unif(ks[6], (d_inner, d_model), b_out),
        "out_b": unif(ks[7], (1, d_model), b_out),
    }


def reference_forward(u, params, *, d_state, d_conv, expand, headdim, chunk_size):
    """Pure-JAX f32 reference (sequential SSM recurrence, identical math)."""
    batch, L, d_model = u.shape
    d_inner = expand * d_model
    nheads = d_inner // headdim
    conv_dim = d_inner + 2 * d_state
    Lp = ((L + chunk_size - 1) // chunk_size) * chunk_size
    up = jnp.pad(u, ((0, 0), (0, Lp - L), (0, 0))).astype(jnp.float32)

    zxbcdt = up @ params["in_w"] + params["in_b"]
    z = zxbcdt[..., :d_inner]
    xBC = zxbcdt[..., d_inner:d_inner + conv_dim]
    dt_raw = zxbcdt[..., d_inner + conv_dim:]
    dt = jax.nn.softplus(dt_raw + params["dt_bias"])

    xpad = jnp.pad(xBC, ((0, 0), (d_conv - 1, 0), (0, 0)))
    conv = sum(params["conv_w"][k] * xpad[:, k:k + Lp, :] for k in range(d_conv))
    conv = conv + params["conv_b"]
    xBC = conv * jax.nn.sigmoid(conv)

    x = xBC[..., :d_inner].reshape(batch, Lp, nheads, headdim)
    Bm = xBC[..., d_inner:d_inner + d_state]
    Cm = xBC[..., d_inner + d_state:]
    Adt = (-jnp.exp(params["A_log"])) * dt

    def step(s, inp):
        x_t, b_t, c_t, adt_t, dt_t = inp
        s = jnp.exp(adt_t)[:, :, None, None] * s \
            + (dt_t[:, :, None] * x_t)[..., None] * b_t[:, None, None, :]
        y_t = jnp.einsum('bhpn,bn->bhp', s, c_t)
        return s, y_t

    xs = (jnp.swapaxes(x, 0, 1), jnp.swapaxes(Bm, 0, 1), jnp.swapaxes(Cm, 0, 1),
          jnp.swapaxes(Adt, 0, 1), jnp.swapaxes(dt, 0, 1))
    s0 = jnp.zeros((batch, nheads, headdim, d_state), jnp.float32)
    _, ys = jax.lax.scan(step, s0, xs)
    y = jnp.swapaxes(ys, 0, 1).reshape(batch, Lp, d_inner)

    yg = y * (z * jax.nn.sigmoid(z))
    mean = jnp.mean(yg, axis=-1, keepdims=True)
    var = jnp.mean((yg - mean) ** 2, axis=-1, keepdims=True)
    yn = (yg - mean) * jax.lax.rsqrt(var + 1e-5)
    yn = yn * params["norm_w"] + params["norm_b"]
    out = yn @ params["out_w"] + params["out_b"]
    return out[:, :L, :]


if __name__ == "__main__":
    # Small config: d_model=16, expand=2 -> d_inner=32, headdim=8 -> nheads=4,
    # d_state=8, ngroups=1, d_conv=4, chunk_size=8.  seqlen=12 exercises the
    # pad/truncate path and the cross-chunk conv/state carries (2 chunks).
    # batch=2 keeps the "parallel" grid axis even (both v7x TensorCores fed).
    d_model, d_state, d_conv, expand, headdim, chunk_size = 16, 8, 4, 2, 8, 8

    key = jax.random.PRNGKey(0)
    pkey, ukey = jax.random.split(key)
    params = init_params(pkey, d_model=d_model, d_state=d_state, d_conv=d_conv,
                         expand=expand, headdim=headdim)

    u = jax.random.normal(ukey, (2, 12, d_model), jnp.float32)

    out = mamba2_forward(u, params, d_state=d_state, d_conv=d_conv,
                         expand=expand, headdim=headdim, chunk_size=chunk_size)
    out = jax.block_until_ready(out)
    assert out.shape == u.shape, (out.shape, u.shape)

    ref = reference_forward(u, params, d_state=d_state, d_conv=d_conv,
                            expand=expand, headdim=headdim,
                            chunk_size=chunk_size)
    ref = jax.block_until_ready(ref)
    max_err = float(jnp.max(jnp.abs(out - ref)))
    scale = float(jnp.max(jnp.abs(ref)))
    # loose tolerance: kernel uses bf16 matmul operands + approx output gate
    assert max_err <= 0.1 + 0.1 * scale, (max_err, scale)

    print("KERNEL_OK")
</pallas_src>

<mosaic_0001>
module attributes {stable_mosaic.version = 11 : i64} {
  func.func @mamba2_kernel(%arg0: i32, %arg1: i32, %arg2: memref<1x8x16xf32, #tpu.memory_space<vmem>>, %arg3: memref<16x32xbf16, #tpu.memory_space<vmem>>, %arg4: memref<1x32xf32, #tpu.memory_space<vmem>>, %arg5: memref<16x52xbf16, #tpu.memory_space<vmem>>, %arg6: memref<1x52xf32, #tpu.memory_space<vmem>>, %arg7: memref<4x48xf32, #tpu.memory_space<vmem>>, %arg8: memref<1x48xf32, #tpu.memory_space<vmem>>, %arg9: memref<1x4xf32, #tpu.memory_space<vmem>>, %arg10: memref<1x4xf32, #tpu.memory_space<vmem>>, %arg11: memref<4x32xbf16, #tpu.memory_space<vmem>>, %arg12: memref<1x32xf32, #tpu.memory_space<vmem>>, %arg13: memref<1x32xf32, #tpu.memory_space<vmem>>, %arg14: memref<32x16xbf16, #tpu.memory_space<vmem>>, %arg15: memref<1x16xf32, #tpu.memory_space<vmem>>, %arg16: memref<1x8x16xf32, #tpu.memory_space<vmem>>, %arg17: memref<8x32xf32, #tpu.memory_space<vmem>>, %arg18: memref<16x48xf32, #tpu.memory_space<vmem>>) attributes {dimension_semantics = [#tpu.dimension_semantics<parallel>, #tpu.dimension_semantics<arbitrary>], iteration_bounds = array<i64: 2, 2>, scalar_prefetch = 0 : i64, scratch_operands = 2 : i64, tpu.core_type = #tpu.core_type<tc>, window_params = [{transform_indices = @transform_0, window_bounds = array<i64: 1, 8, 16>}, {pipeline_mode = #tpu.pipeline_mode<synchronous>, transform_indices = @transform_1, window_bounds = array<i64: 16, 32>}, {pipeline_mode = #tpu.pipeline_mode<synchronous>, transform_indices = @transform_2, window_bounds = array<i64: 1, 32>}, {pipeline_mode = #tpu.pipeline_mode<synchronous>, transform_indices = @transform_3, window_bounds = array<i64: 16, 52>}, {pipeline_mode = #tpu.pipeline_mode<synchronous>, transform_indices = @transform_4, window_bounds = array<i64: 1, 52>}, {pipeline_mode = #tpu.pipeline_mode<synchronous>, transform_indices = @transform_5, window_bounds = array<i64: 4, 48>}, {pipeline_mode = #tpu.pipeline_mode<synchronous>, transform_indices = @transform_6, window_bounds = array<i64: 1, 48>}, {pipeline_mode = #tpu.pipeline_mode<synchronous>, transform_indices = @transform_7, window_bounds = array<i64: 1, 4>}, {pipeline_mode = #tpu.pipeline_mode<synchronous>, transform_indices = @transform_8, window_bounds = array<i64: 1, 4>}, {pipeline_mode = #tpu.pipeline_mode<synchronous>, transform_indices = @transform_9, window_bounds = array<i64: 4, 32>}, {pipeline_mode = #tpu.pipeline_mode<synchronous>, transform_indices = @transform_10, window_bounds = array<i64: 1, 32>}, {pipeline_mode = #tpu.pipeline_mode<synchronous>, transform_indices = @transform_11, window_bounds = array<i64: 1, 32>}, {pipeline_mode = #tpu.pipeline_mode<synchronous>, transform_indices = @transform_12, window_bounds = array<i64: 32, 16>}, {pipeline_mode = #tpu.pipeline_mode<synchronous>, transform_indices = @transform_13, window_bounds = array<i64: 1, 16>}, {transform_indices = @transform_14, window_bounds = array<i64: 1, 8, 16>}]} {
    %c0_i32 = arith.constant 0 : i32
    %0 = arith.cmpi eq, %arg1, %c0_i32 : i32
    %1 = arith.extui %0 : i1 to i32
    %c0_i32_0 = arith.constant 0 : i32
    %2 = arith.cmpi ne, %1, %c0_i32_0 : i32
    scf.if %2 {
      %cst_74 = arith.constant 0.000000e+00 : f32
      %158 = vector.broadcast %cst_74 : f32 to vector<8x32xf32>
      %c0_75 = arith.constant 0 : index
      %c0_76 = arith.constant 0 : index
      %159 = vector.load %arg17[%c0_75, %c0_76] : memref<8x32xf32, #tpu.memory_space<vmem>>, vector<8x32xf32>
      tpu.vector_store %arg17[%c0_75, %c0_76], %158 {strides = array<i32>} : memref<8x32xf32, #tpu.memory_space<vmem>>, vector<8x32xf32>,
      %cst_77 = arith.constant 0.000000e+00 : f32
      %160 = vector.broadcast %cst_77 : f32 to vector<16x48xf32>
      %c0_78 = arith.constant 0 : index
      %c0_79 = arith.constant 0 : index
      %161 = vector.load %arg18[%c0_78, %c0_79] : memref<16x48xf32, #tpu.memory_space<vmem>>, vector<16x48xf32>
      tpu.vector_store %arg18[%c0_78, %c0_79], %160 {strides = array<i32>} : memref<16x48xf32, #tpu.memory_space<vmem>>, vector<16x48xf32>,
    } else {
    }
    %c0 = arith.constant 0 : index
    %c0_1 = arith.constant 0 : index
    %c0_2 = arith.constant 0 : index
    %3 = vector.load %arg2[%c0, %c0_1, %c0_2] : memref<1x8x16xf32, #tpu.memory_space<vmem>>, vector<1x8x16xf32>
    %4 = vector.shape_cast %3 : vector<1x8x16xf32> to vector<8x16xf32>
    %5 = arith.truncf %4 : vector<8x16xf32> to vector<8x16xbf16>
    %c0_3 = arith.constant 0 : index
    %c0_4 = arith.constant 0 : index
    %6 = vector.load %arg3[%c0_3, %c0_4] : memref<16x32xbf16, #tpu.memory_space<vmem>>, vector<16x32xbf16>
    %cst = arith.constant dense<0.000000e+00> : vector<8x32xf32>
    %7 = tpu.matmul %5, %6, %cst {dimension_numbers = #tpu.dot_dimension_numbers<[1], [0], [0], [1], [0, 0, 1, 1], [], []>} : vector<8x16xbf16>, vector<16x32xbf16>, vector<8x32xf32> -> vector<8x32xf32>
    %c0_5 = arith.constant 0 : index
    %c0_6 = arith.constant 0 : index
    %8 = vector.load %arg4[%c0_5, %c0_6] : memref<1x32xf32, #tpu.memory_space<vmem>>, vector<1x32xf32>
    %9 = vector.broadcast %8 : vector<1x32xf32> to vector<8x32xf32>
    %10 = arith.addf %7, %9 : vector<8x32xf32>
    %c0_7 = arith.constant 0 : index
    %c0_8 = arith.constant 0 : index
    %11 = vector.load %arg5[%c0_7, %c0_8] : memref<16x52xbf16, #tpu.memory_space<vmem>>, vector<16x52xbf16>
    %cst_9 = arith.constant dense<0.000000e+00> : vector<8x52xf32>
    %12 = tpu.matmul %5, %11, %cst_9 {dimension_numbers = #tpu.dot_dimension_numbers<[1], [0], [0], [1], [0, 0, 1, 1], [], []>} : vector<8x16xbf16>, vector<16x52xbf16>, vector<8x52xf32> -> vector<8x52xf32>
    %c0_10 = arith.constant 0 : index
    %c0_11 = arith.constant 0 : index
    %13 = vector.load %arg6[%c0_10, %c0_11] : memref<1x52xf32, #tpu.memory_space<vmem>>, vector<1x52xf32>
    %14 = vector.broadcast %13 : vector<1x52xf32> to vector<8x52xf32>
    %15 = arith.addf %12, %14 : vector<8x52xf32>
    %16 = vector.extract_strided_slice %15 {offsets = [0, 0], sizes = [8, 48], strides = [1, 1]} : vector<8x52xf32> to vector<8x48xf32>
    %17 = vector.extract_strided_slice %15 {offsets = [0, 48], sizes = [8, 4], strides = [1, 1]} : vector<8x52xf32> to vector<8x4xf32>
    %c8 = arith.constant 8 : index
    %c0_12 = arith.constant 0 : index
    %18 = vector.load %arg18[%c8, %c0_12] : memref<16x48xf32, #tpu.memory_space<vmem>>, vector<8x48xf32>
    tpu.vector_store %arg18[%c8, %c0_12], %16 {strides = array<i32>} : memref<16x48xf32, #tpu.memory_space<vmem>>, vector<8x48xf32>,
    %cst_13 = arith.constant 0.000000e+00 : f32
    %19 = vector.broadcast %cst_13 : f32 to vector<8x48xf32>
    %c5 = arith.constant 5 : index
    %c0_14 = arith.constant 0 : index
    %20 = vector.load %arg18[%c5, %c0_14] : memref<16x48xf32, #tpu.memory_space<vmem>>, vector<8x48xf32>
    %c0_15 = arith.constant 0 : index
    %c0_16 = arith.constant 0 : index
    %21 = vector.load %arg7[%c0_15, %c0_16] : memref<4x48xf32, #tpu.memory_space<vmem>>, vector<1x48xf32>
    %22 = vector.broadcast %21 : vector<1x48xf32> to vector<8x48xf32>
    %23 = arith.mulf %20, %22 : vector<8x48xf32>
    %24 = arith.addf %19, %23 : vector<8x48xf32>
    %c6 = arith.constant 6 : index
    %c0_17 = arith.constant 0 : index
    %25 = vector.load %arg18[%c6, %c0_17] : memref<16x48xf32, #tpu.memory_space<vmem>>, vector<8x48xf32>
    %c1 = arith.constant 1 : index
    %c0_18 = arith.constant 0 : index
    %26 = vector.load %arg7[%c1, %c0_18] : memref<4x48xf32, #tpu.memory_space<vmem>>, vector<1x48xf32>
    %27 = vector.broadcast %26 : vector<1x48xf32> to vector<8x48xf32>
    %28 = arith.mulf %25, %27 : vector<8x48xf32>
    %29 = arith.addf %24, %28 : vector<8x48xf32>
    %c7 = arith.constant 7 : index
    %c0_19 = arith.constant 0 : index
    %30 = vector.load %arg18[%c7, %c0_19] : memref<16x48xf32, #tpu.memory_space<vmem>>, vector<8x48xf32>
    %c2 = arith.constant 2 : index
    %c0_20 = arith.constant 0 : index
    %31 = vector.load %arg7[%c2, %c0_20] : memref<4x48xf32, #tpu.memory_space<vmem>>, vector<1x48xf32>
    %32 = vector.broadcast %31 : vector<1x48xf32> to vector<8x48xf32>
    %33 = arith.mulf %30, %32 : vector<8x48xf32>
    %34 = arith.addf %29, %33 : vector<8x48xf32>
    %c8_21 = arith.constant 8 : index
    %c0_22 = arith.constant 0 : index
    %35 = vector.load %arg18[%c8_21, %c0_22] : memref<16x48xf32, #tpu.memory_space<vmem>>, vector<8x48xf32>
    %c3 = arith.constant 3 : index
    %c0_23 = arith.constant 0 : index
    %36 = vector.load %arg7[%c3, %c0_23] : memref<4x48xf32, #tpu.memory_space<vmem>>, vector<1x48xf32>
    %37 = vector.broadcast %36 : vector<1x48xf32> to vector<8x48xf32>
    %38 = arith.mulf %35, %37 : vector<8x48xf32>
    %39 = arith.addf %34, %38 : vector<8x48xf32>
    %c0_24 = arith.constant 0 : index
    %c0_25 = arith.constant 0 : index
    %40 = vector.load %arg8[%c0_24, %c0_25] : memref<1x48xf32, #tpu.memory_space<vmem>>, vector<1x48xf32>
    %41 = vector.broadcast %40 : vector<1x48xf32> to vector<8x48xf32>
    %42 = arith.addf %39, %41 : vector<8x48xf32>
    %c0_26 = arith.constant 0 : index
    %c0_27 = arith.constant 0 : index
    %43 = vector.load %arg18[%c0_26, %c0_27] : memref<16x48xf32, #tpu.memory_space<vmem>>, vector<8x48xf32>
    tpu.vector_store %arg18[%c0_26, %c0_27], %16 {strides = array<i32>} : memref<16x48xf32, #tpu.memory_space<vmem>>, vector<8x48xf32>,
    %cst_28 = arith.constant 0.000000e+00 : f32
    %44 = vector.broadcast %cst_28 : f32 to vector<8x48xf32>
    %45 = arith.subf %44, %42 : vector<8x48xf32>
    %46 = math.exp %45 : vector<8x48xf32>
    %cst_29 = arith.constant 1.000000e+00 : f32
    %47 = vector.broadcast %cst_29 : f32 to vector<8x48xf32>
    %48 = arith.addf %47, %46 : vector<8x48xf32>
    %49 = arith.divf %42, %48 : vector<8x48xf32>
    %50 = vector.extract_strided_slice %49 {offsets = [0, 0], sizes = [8, 32], strides = [1, 1]} : vector<8x48xf32> to vector<8x32xf32>
    %51 = vector.extract_strided_slice %49 {offsets = [0, 32], sizes = [8, 8], strides = [1, 1]} : vector<8x48xf32> to vector<8x8xf32>
    %52 = vector.extract_strided_slice %49 {offsets = [0, 40], sizes = [8, 8], strides = [1, 1]} : vector<8x48xf32> to vector<8x8xf32>
    %c0_30 = arith.constant 0 : index
    %c0_31 = arith.constant 0 : index
    %53 = vector.load %arg9[%c0_30, %c0_31] : memref<1x4xf32, #tpu.memory_space<vmem>>, vector<1x4xf32>
    %54 = vector.broadcast %53 : vector<1x4xf32> to vector<8x4xf32>
    %55 = arith.addf %17, %54 : vector<8x4xf32>
    %cst_32 = arith.constant 0.000000e+00 : f32
    %56 = vector.broadcast %cst_32 : f32 to vector<8x4xf32>
    %57 = arith.maximumf %55, %56 : vector<8x4xf32>
    %58 = math.absf %55 : vector<8x4xf32>
    %cst_33 = arith.constant 0.000000e+00 : f32
    %59 = vector.broadcast %cst_33 : f32 to vector<8x4xf32>
    %60 = arith.subf %59, %58 : vector<8x4xf32>
    %61 = math.exp %60 : vector<8x4xf32>
    %cst_34 = arith.constant 1.000000e+00 : f32
    %62 = vector.broadcast %cst_34 : f32 to vector<8x4xf32>
    %63 = arith.addf %62, %61 : vector<8x4xf32>
    %64 = math.log %63 : vector<8x4xf32>
    %65 = arith.addf %57, %64 : vector<8x4xf32>
    %c0_35 = arith.constant 0 : index
    %c0_36 = arith.constant 0 : index
    %66 = vector.load %arg10[%c0_35, %c0_36] : memref<1x4xf32, #tpu.memory_space<vmem>>, vector<1x4xf32>
    %67 = math.exp %66 : vector<1x4xf32>
    %cst_37 = arith.constant 0.000000e+00 : f32
    %68 = vector.broadcast %cst_37 : f32 to vector<1x4xf32>
    %69 = arith.subf %68, %67 : vector<1x4xf32>
    %70 = vector.broadcast %69 : vector<1x4xf32> to vector<8x4xf32>
    %71 = arith.mulf %70, %65 : vector<8x4xf32>
    %72 = tpu.iota {dimensions = array<i32: 0>} : vector<8x8xi32>
    %73 = tpu.iota {dimensions = array<i32: 1>} : vector<8x8xi32>
    %74 = arith.cmpi sge, %72, %73 : vector<8x8xi32>
    %75 = arith.extui %74 : vector<8x8xi1> to vector<8x8xi32>
    %76 = arith.sitofp %75 : vector<8x8xi32> to vector<8x8xf32>
    %cst_38 = arith.constant dense<0.000000e+00> : vector<8x4xf32>
    %77 = tpu.matmul %76, %71, %cst_38 {dimension_numbers = #tpu.dot_dimension_numbers<[1], [0], [0], [1], [0, 0, 1, 1], [], []>} : vector<8x8xf32>, vector<8x4xf32>, vector<8x4xf32> -> vector<8x4xf32>
    %78 = vector.extract_strided_slice %77 {offsets = [7, 0], sizes = [1, 4], strides = [1, 1]} : vector<8x4xf32> to vector<1x4xf32>
    %c0_39 = arith.constant 0 : index
    %c0_40 = arith.constant 0 : index
    %79 = vector.load %arg11[%c0_39, %c0_40] : memref<4x32xbf16, #tpu.memory_space<vmem>>, vector<4x32xbf16>
    %80 = arith.truncf %65 : vector<8x4xf32> to vector<8x4xbf16>
    %cst_41 = arith.constant dense<0.000000e+00> : vector<8x32xf32>
    %81 = tpu.matmul %80, %79, %cst_41 {dimension_numbers = #tpu.dot_dimension_numbers<[1], [0], [0], [1], [0, 0, 1, 1], [], []>} : vector<8x4xbf16>, vector<4x32xbf16>, vector<8x32xf32> -> vector<8x32xf32>
    %82 = math.exp %77 : vector<8x4xf32>
    %83 = arith.truncf %82 : vector<8x4xf32> to vector<8x4xbf16>
    %cst_42 = arith.constant dense<0.000000e+00> : vector<8x32xf32>
    %84 = tpu.matmul %83, %79, %cst_42 {dimension_numbers = #tpu.dot_dimension_numbers<[1], [0], [0], [1], [0, 0, 1, 1], [], []>} : vector<8x4xbf16>, vector<4x32xbf16>, vector<8x32xf32> -> vector<8x32xf32>
    %cst_43 = arith.constant 0.000000e+00 : f32
    %85 = vector.broadcast %cst_43 : f32 to vector<8x4xf32>
    %86 = arith.subf %85, %77 : vector<8x4xf32>
    %cst_44 = arith.constant 6.400000e+01 : f32
    %87 = vector.broadcast %cst_44 : f32 to vector<8x4xf32>
    %88 = arith.minimumf %86, %87 : vector<8x4xf32>
    %89 = math.exp %88 : vector<8x4xf32>
    %90 = arith.truncf %89 : vector<8x4xf32> to vector<8x4xbf16>
    %cst_45 = arith.constant dense<0.000000e+00> : vector<8x32xf32>
    %91 = tpu.matmul %90, %79, %cst_45 {dimension_numbers = #tpu.dot_dimension_numbers<[1], [0], [0], [1], [0, 0, 1, 1], [], []>} : vector<8x4xbf16>, vector<4x32xbf16>, vector<8x32xf32> -> vector<8x32xf32>
    %92 = vector.broadcast %78 : vector<1x4xf32> to vector<8x4xf32>
    %93 = arith.subf %92, %77 : vector<8x4xf32>
    %94 = math.exp %93 : vector<8x4xf32>
    %95 = arith.truncf %94 : vector<8x4xf32> to vector<8x4xbf16>
    %cst_46 = arith.constant dense<0.000000e+00> : vector<8x32xf32>
    %96 = tpu.matmul %95, %79, %cst_46 {dimension_numbers = #tpu.dot_dimension_numbers<[1], [0], [0], [1], [0, 0, 1, 1], [], []>} : vector<8x4xbf16>, vector<4x32xbf16>, vector<8x32xf32> -> vector<8x32xf32>
    %97 = arith.mulf %50, %81 : vector<8x32xf32>
    %98 = arith.truncf %51 : vector<8x8xf32> to vector<8x8xbf16>
    %99 = arith.truncf %52 : vector<8x8xf32> to vector<8x8xbf16>
    %c0_47 = arith.constant 0 : index
    %c0_48 = arith.constant 0 : index
    %100 = vector.load %arg17[%c0_47, %c0_48] : memref<8x32xf32, #tpu.memory_space<vmem>>, vector<8x32xf32>
    %101 = arith.truncf %100 : vector<8x32xf32> to vector<8x32xbf16>
    %cst_49 = arith.constant dense<0.000000e+00> : vector<8x32xf32>
    %102 = tpu.matmul %99, %101, %cst_49 {dimension_numbers = #tpu.dot_dimension_numbers<[1], [0], [0], [1], [0, 0, 1, 1], [], []>} : vector<8x8xbf16>, vector<8x32xbf16>, vector<8x32xf32> -> vector<8x32xf32>
    %103 = arith.mulf %97, %96 : vector<8x32xf32>
    %104 = arith.truncf %103 : vector<8x32xf32> to vector<8x32xbf16>
    %cst_50 = arith.constant dense<0.000000e+00> : vector<8x32xf32>
    %105 = tpu.matmul %98, %104, %cst_50 {dimension_numbers = #tpu.dot_dimension_numbers<[0], [0], [1], [1], [0, 1, 1, 1], [], []>} : vector<8x8xbf16>, vector<8x32xbf16>, vector<8x32xf32> -> vector<8x32xf32>
    %106 = vector.extract_strided_slice %84 {offsets = [7, 0], sizes = [1, 32], strides = [1, 1]} : vector<8x32xf32> to vector<1x32xf32>
    %107 = vector.broadcast %106 : vector<1x32xf32> to vector<8x32xf32>
    %108 = arith.mulf %107, %100 : vector<8x32xf32>
    %109 = arith.addf %108, %105 : vector<8x32xf32>
    %c0_51 = arith.constant 0 : index
    %c0_52 = arith.constant 0 : index
    %110 = vector.load %arg17[%c0_51, %c0_52] : memref<8x32xf32, #tpu.memory_space<vmem>>, vector<8x32xf32>
    tpu.vector_store %arg17[%c0_51, %c0_52], %109 {strides = array<i32>} : memref<8x32xf32, #tpu.memory_space<vmem>>, vector<8x32xf32>,
    %cst_53 = arith.constant dense<0.000000e+00> : vector<8x8xf32>
    %111 = tpu.matmul %99, %98, %cst_53 {dimension_numbers = #tpu.dot_dimension_numbers<[1], [1], [0], [0], [0, 0, 1, 0], [], []>} : vector<8x8xbf16>, vector<8x8xbf16>, vector<8x8xf32> -> vector<8x8xf32>
    %112 = arith.mulf %111, %76 : vector<8x8xf32>
    %113 = arith.truncf %112 : vector<8x8xf32> to vector<8x8xbf16>
    %114 = arith.mulf %97, %91 : vector<8x32xf32>
    %115 = arith.truncf %114 : vector<8x32xf32> to vector<8x32xbf16>
    %cst_54 = arith.constant dense<0.000000e+00> : vector<8x32xf32>
    %116 = tpu.matmul %113, %115, %cst_54 {dimension_numbers = #tpu.dot_dimension_numbers<[1], [0], [0], [1], [0, 0, 1, 1], [], []>} : vector<8x8xbf16>, vector<8x32xbf16>, vector<8x32xf32> -> vector<8x32xf32>
    %117 = arith.addf %102, %116 : vector<8x32xf32>
    %118 = arith.mulf %117, %84 : vector<8x32xf32>
    %cst_55 = arith.constant 0.000000e+00 : f32
    %119 = vector.broadcast %cst_55 : f32 to vector<8x32xf32>
    %120 = arith.subf %119, %10 : vector<8x32xf32>
    %121 = math.exp %120 : vector<8x32xf32>
    %cst_56 = arith.constant 1.000000e+00 : f32
    %122 = vector.broadcast %cst_56 : f32 to vector<8x32xf32>
    %123 = arith.addf %122, %121 : vector<8x32xf32>
    %124 = tpu.reciprocal %123 {approx = true} : vector<8x32xf32> -> vector<8x32xf32>
    %125 = arith.mulf %10, %124 : vector<8x32xf32>
    %126 = arith.mulf %118, %125 : vector<8x32xf32>
    %cst_57 = arith.constant dense<0.000000e+00> : vector<8xf32>
    %127 = vector.multi_reduction <add>, %126, %cst_57 [1] : vector<8x32xf32> to vector<8xf32>
    %128 = vector.shape_cast %127 : vector<8xf32> to vector<8x1xf32>
    %cst_58 = arith.constant 3.200000e+01 : f32
    %129 = vector.broadcast %cst_58 : f32 to vector<8x1xf32>
    %130 = arith.divf %128, %129 : vector<8x1xf32>
    %131 = vector.broadcast %130 : vector<8x1xf32> to vector<8x32xf32>
    %132 = arith.subf %126, %131 : vector<8x32xf32>
    %133 = arith.mulf %132, %132 : vector<8x32xf32>
    %cst_59 = arith.constant dense<0.000000e+00> : vector<8xf32>
    %134 = vector.multi_reduction <add>, %133, %cst_59 [1] : vector<8x32xf32> to vector<8xf32>
    %135 = vector.shape_cast %134 : vector<8xf32> to vector<8x1xf32>
    %cst_60 = arith.constant 3.200000e+01 : f32
    %136 = vector.broadcast %cst_60 : f32 to vector<8x1xf32>
    %137 = arith.divf %135, %136 : vector<8x1xf32>
    %cst_61 = arith.constant 9.99999974E-6 : f32
    %138 = vector.broadcast %cst_61 : f32 to vector<8x1xf32>
    %139 = arith.addf %137, %138 : vector<8x1xf32>
    %140 = math.rsqrt %139 : vector<8x1xf32>
    %141 = vector.broadcast %140 : vector<8x1xf32> to vector<8x32xf32>
    %142 = arith.mulf %132, %141 : vector<8x32xf32>
    %c0_62 = arith.constant 0 : index
    %c0_63 = arith.constant 0 : index
    %143 = vector.load %arg12[%c0_62, %c0_63] : memref<1x32xf32, #tpu.memory_space<vmem>>, vector<1x32xf32>
    %144 = vector.broadcast %143 : vector<1x32xf32> to vector<8x32xf32>
    %145 = arith.mulf %142, %144 : vector<8x32xf32>
    %c0_64 = arith.constant 0 : index
    %c0_65 = arith.constant 0 : index
    %146 = vector.load %arg13[%c0_64, %c0_65] : memref<1x32xf32, #tpu.memory_space<vmem>>, vector<1x32xf32>
    %147 = vector.broadcast %146 : vector<1x32xf32> to vector<8x32xf32>
    %148 = arith.addf %145, %147 : vector<8x32xf32>
    %149 = arith.truncf %148 : vector<8x32xf32> to vector<8x32xbf16>
    %c0_66 = arith.constant 0 : index
    %c0_67 = arith.constant 0 : index
    %150 = vector.load %arg14[%c0_66, %c0_67] : memref<32x16xbf16, #tpu.memory_space<vmem>>, vector<32x16xbf16>
    %cst_68 = arith.constant dense<0.000000e+00> : vector<8x16xf32>
    %151 = tpu.matmul %149, %150, %cst_68 {dimension_numbers = #tpu.dot_dimension_numbers<[1], [0], [0], [1], [0, 0, 1, 1], [], []>} : vector<8x32xbf16>, vector<32x16xbf16>, vector<8x16xf32> -> vector<8x16xf32>
    %c0_69 = arith.constant 0 : index
    %c0_70 = arith.constant 0 : index
    %152 = vector.load %arg15[%c0_69, %c0_70] : memref<1x16xf32, #tpu.memory_space<vmem>>, vector<1x16xf32>
    %153 = vector.broadcast %152 : vector<1x16xf32> to vector<8x16xf32>
    %154 = arith.addf %151, %153 : vector<8x16xf32>
    %c0_71 = arith.constant 0 : index
    %c0_72 = arith.constant 0 : index
    %c0_73 = arith.constant 0 : index
    %155 = vector.load %arg16[%c0_71, %c0_72, %c0_73] : memref<1x8x16xf32, #tpu.memory_space<vmem>>, vector<1x8x16xf32>
    %156 = vector.shape_cast %155 : vector<1x8x16xf32> to vector<8x16xf32>
    %157 = vector.shape_cast %154 : vector<8x16xf32> to vector<1x8x16xf32>
    tpu.vector_store %arg16[%c0_71, %c0_72, %c0_73], %157 {strides = array<i32>} : memref<1x8x16xf32, #tpu.memory_space<vmem>>, vector<1x8x16xf32>,
    return
  }
  func.func @transform_0(%arg0: i32, %arg1: i32) -> (i32, i32, i32) {
    %c0_i32 = arith.constant 0 : i32
    %c0_i32_0 = arith.constant 0 : i32
    return %arg0, %arg1, %c0_i32 : i32, i32, i32
  }
  func.func @transform_1(%arg0: i32, %arg1: i32) -> (i32, i32) {
    %c0_i32 = arith.constant 0 : i32
    %c0_i32_0 = arith.constant 0 : i32
    %c0_i32_1 = arith.constant 0 : i32
    return %c0_i32, %c0_i32_0 : i32, i32
  }
  func.func @transform_2(%arg0: i32, %arg1: i32) -> (i32, i32) {
    %c0_i32 = arith.constant 0 : i32
    %c0_i32_0 = arith.constant 0 : i32
    %c0_i32_1 = arith.constant 0 : i32
    return %c0_i32, %c0_i32_0 : i32, i32
  }
  func.func @transform_3(%arg0: i32, %arg1: i32) -> (i32, i32) {
    %c0_i32 = arith.constant 0 : i32
    %c0_i32_0 = arith.constant 0 : i32
    %c0_i32_1 = arith.constant 0 : i32
    return %c0_i32, %c0_i32_0 : i32, i32
  }
  func.func @transform_4(%arg0: i32, %arg1: i32) -> (i32, i32) {
    %c0_i32 = arith.constant 0 : i32
    %c0_i32_0 = arith.constant 0 : i32
    %c0_i32_1 = arith.constant 0 : i32
    return %c0_i32, %c0_i32_0 : i32, i32
  }
  func.func @transform_5(%arg0: i32, %arg1: i32) -> (i32, i32) {
    %c0_i32 = arith.constant 0 : i32
    %c0_i32_0 = arith.constant 0 : i32
    %c0_i32_1 = arith.constant 0 : i32
    return %c0_i32, %c0_i32_0 : i32, i32
  }
  func.func @transform_6(%arg0: i32, %arg1: i32) -> (i32, i32) {
    %c0_i32 = arith.constant 0 : i32
    %c0_i32_0 = arith.constant 0 : i32
    %c0_i32_1 = arith.constant 0 : i32
    return %c0_i32, %c0_i32_0 : i32, i32
  }
  func.func @transform_7(%arg0: i32, %arg1: i32) -> (i32, i32) {
    %c0_i32 = arith.constant 0 : i32
    %c0_i32_0 = arith.constant 0 : i32
    %c0_i32_1 = arith.constant 0 : i32
    return %c0_i32, %c0_i32_0 : i32, i32
  }
  func.func @transform_8(%arg0: i32, %arg1: i32) -> (i32, i32) {
    %c0_i32 = arith.constant 0 : i32
    %c0_i32_0 = arith.constant 0 : i32
    %c0_i32_1 = arith.constant 0 : i32
    return %c0_i32, %c0_i32_0 : i32, i32
  }
  func.func @transform_9(%arg0: i32, %arg1: i32) -> (i32, i32) {
    %c0_i32 = arith.constant 0 : i32
    %c0_i32_0 = arith.constant 0 : i32
    %c0_i32_1 = arith.constant 0 : i32
    return %c0_i32, %c0_i32_0 : i32, i32
  }
  func.func @transform_10(%arg0: i32, %arg1: i32) -> (i32, i32) {
    %c0_i32 = arith.constant 0 : i32
    %c0_i32_0 = arith.constant 0 : i32
    %c0_i32_1 = arith.constant 0 : i32
    return %c0_i32, %c0_i32_0 : i32, i32
  }
  func.func @transform_11(%arg0: i32, %arg1: i32) -> (i32, i32) {
    %c0_i32 = arith.constant 0 : i32
    %c0_i32_0 = arith.constant 0 : i32
    %c0_i32_1 = arith.constant 0 : i32
    return %c0_i32, %c0_i32_0 : i32, i32
  }
  func.func @transform_12(%arg0: i32, %arg1: i32) -> (i32, i32) {
    %c0_i32 = arith.constant 0 : i32
    %c0_i32_0 = arith.constant 0 : i32
    %c0_i32_1 = arith.constant 0 : i32
    return %c0_i32, %c0_i32_0 : i32, i32
  }
  func.func @transform_13(%arg0: i32, %arg1: i32) -> (i32, i32) {
    %c0_i32 = arith.constant 0 : i32
    %c0_i32_0 = arith.constant 0 : i32
    %c0_i32_1 = arith.constant 0 : i32
    return %c0_i32, %c0_i32_0 : i32, i32
  }
  func.func @transform_14(%arg0: i32, %arg1: i32) -> (i32, i32, i32) {
    %c0_i32 = arith.constant 0 : i32
    %c0_i32_0 = arith.constant 0 : i32
    return %arg0, %arg1, %c0_i32 : i32, i32, i32
  }
}

</mosaic_0001>

<llo_original>
// kernel: tpu_custom_call.1
$region0: #{tpu_custom_call.1}
  #allocation0 [shape = 'u32[]', space=smem, size = 0x4, offset = 0x4, fixed_abs, tag = 'smem constant byte address 0x4 - core index']
  #allocation1 [shape = 'u32[144,128]{1,0:T(1,128)}', space=vmem, size = 0x12000, scoped, tag = 'internal scratch']
  #allocation2 [shape = 'f32[8,32]{1,0:T(8,128)}', space=vmem, size = 0x1000, scoped, tag = 'scratch operand']
  #allocation3 [shape = 'f32[16,48]{1,0:T(8,128)}', space=vmem, size = 0x2000, scoped, tag = 'scratch operand']
  %s0 = inlined_call_operand.hbm [shape: f32[2,16,16], index: 0, kind: input, shape index: {}]
  %s1 = inlined_call_operand.vmem [shape: bf16[16,32], index: 1, kind: input, shape index: {}]
  %s2 = inlined_call_operand.vmem [shape: f32[1,32], index: 2, kind: input, shape index: {}]
  %s3 = inlined_call_operand.vmem [shape: bf16[16,52], index: 3, kind: input, shape index: {}]
  %s4 = inlined_call_operand.vmem [shape: f32[1,52], index: 4, kind: input, shape index: {}]
  %s5 = inlined_call_operand.vmem [shape: f32[4,48], index: 5, kind: input, shape index: {}]
  %s6 = inlined_call_operand.vmem [shape: f32[1,48], index: 6, kind: input, shape index: {}]
  %s7 = inlined_call_operand.vmem [shape: f32[1,4], index: 7, kind: input, shape index: {}]
  %s8 = inlined_call_operand.vmem [shape: f32[1,4], index: 8, kind: input, shape index: {}]
  %s9 = inlined_call_operand.vmem [shape: bf16[4,32], index: 9, kind: input, shape index: {}]
  %s10 = inlined_call_operand.vmem [shape: f32[1,32], index: 10, kind: input, shape index: {}]
  %s11 = inlined_call_operand.vmem [shape: f32[1,32], index: 11, kind: input, shape index: {}]
  %s12 = inlined_call_operand.vmem [shape: bf16[32,16], index: 12, kind: input, shape index: {}]
  %s13 = inlined_call_operand.vmem [shape: f32[1,16], index: 13, kind: input, shape index: {}]
  %s14 = inlined_call_operand.hbm [shape: f32[2,16,16], index: 14, kind: output, shape index: {}]
  %s15 = sld [smem:[#allocation0]]
  $region97: #{tpu_custom_call.1} parent=0
    _
  %s17 = ssub.s32 1, %s15
  %s18 = scalar_select 0, %s17, %s15
  $region1: #{tpu_custom_call.1} parent=0
    #allocation4 [shape = 'u8[8192]{0}', space=vmem, size = 0x2000, scoped, tag = 'input window, operand 0']
    #allocation5 [shape = 's32[2]{0}', space=sflag, size = 0x8, scoped, tag = 'scoped memory for tpu_custom_call.1']
    #allocation6 [shape = 's32[2]{0}', space=sflag, size = 0x8, scoped, tag = 'scoped memory for tpu_custom_call.1']
    #allocation7 [shape = 'u8[8192]{0}', space=vmem, size = 0x2000, scoped, tag = 'output window, operand 0']
    %19 = vsyncpa [#allocation5], 0
    %s20 = scalar_lea.sflag [#allocation5], 1
    %21 = vsyncpa %s20, 0
    %22 = vsyncpa [#allocation6], 0
    %s23 = scalar_lea.sflag [#allocation6], 1
    %24 = vsyncpa %s23, 0
    loop: start=0, step=1, limit=6
    $region2: #{tpu_custom_call.1} parent=1 // loop_pre_header
      _
    $region3: #{tpu_custom_call.1} parent=1 // loop_header
      %s26 = sphi 0, %s30
      %p27 = scmp.ge.s32.totalorder %s26, 6
      %s33 = sphi 0, %s45
      %s34 = sphi 0, %s41
      %s35 = sphi 0, %s33
      %s36 = sphi 0, %s34
      %s37 = sphi 0, %s35
      %s38 = sphi 0, %s36
      %s50 = sphi 0, %s52
      %s53 = sphi 0, %s50
      %s54 = sphi 0, %s53
      %s70 = sphi 0, %s54
      %s74 = sphi 0, %s74
      %s76 = sphi 0, %s74
      %s77 = sphi 0, %s76
      %s91 = sphi 0, %s77
      %s95 = sphi 0, %s95
      %s97 = sphi 0, %s95
      %s98 = sphi 0, %s97
      %s112 = sphi 0, %s98
      %s116 = sphi 0, %s116
      %s118 = sphi 0, %s116
      %s119 = sphi 0, %s118
      %s133 = sphi 0, %s119
      %s137 = sphi 0, %s137
      %s139 = sphi 0, %s137
      %s140 = sphi 0, %s139
      %s154 = sphi 0, %s140
      %s158 = sphi 0, %s158
      %s160 = sphi 0, %s158
      %s161 = sphi 0, %s160
      %s175 = sphi 0, %s161
      %s179 = sphi 0, %s179
      %s181 = sphi 0, %s179
      %s182 = sphi 0, %s181
      %s196 = sphi 0, %s182
      %s200 = sphi 0, %s200
      %s202 = sphi 0, %s200
      %s203 = sphi 0, %s202
      %s217 = sphi 0, %s203
      %s221 = sphi 0, %s221
      %s223 = sphi 0, %s221
      %s224 = sphi 0, %s223
      %s238 = sphi 0, %s224
      %s242 = sphi 0, %s242
      %s244 = sphi 0, %s242
      %s245 = sphi 0, %s244
      %s259 = sphi 0, %s245
      %s263 = sphi 0, %s263
      %s265 = sphi 0, %s263
      %s266 = sphi 0, %s265
      %s280 = sphi 0, %s266
      %s284 = sphi 0, %s284
      %s286 = sphi 0, %s284
      %s287 = sphi 0, %s286
      %s301 = sphi 0, %s287
      %s305 = sphi 0, %s305
      %s307 = sphi 0, %s305
      %s308 = sphi 0, %s307
      %s322 = sphi 0, %s308
      %s326 = sphi 0, %s326
      %s328 = sphi 0, %s326
      %s329 = sphi 0, %s328
      %s343 = sphi 0, %s329
      %s351 = sphi 0, %s353
      %s354 = sphi 0, %s351
      %s355 = sphi 0, %s354
      %s371 = sphi 0, %s355
    $region4: #{tpu_custom_call.1} parent=1 // loop_header_branch
      %29 = sbr.rel (%p27) target = $region8
    $region5: #{tpu_custom_call.1} parent=1 // loop_body
      %s31 = ssub.s32 %s26, 1
      %s32 = ssub.s32 %s26, 2
      %s39 = sadd.s32 1, %s34
      %p40 = scmp.ge.s32.totalorder %s39, 2
      %s41 = scalar_select %p40, 0, %s39
      %s42 = sadd.s32 1, %s33
      %s43 = scalar_select %p40, %s42, %s33
      %p44 = scmp.ge.s32.totalorder %s43, 2
      %s45 = scalar_select %p44, 0, %s43
      %s46 = ssub.s32 %s33, %s45
      %s47 = ssub.s32 %s34, %s41
      %s48 = sor.u32 %s46, %s47
      %p49 = scmp.eq.s32.totalorder %s48, 0
      %s51 = sadd.s32 %s50, 1
      %s52 = scalar_select %p49, %s50, %s51
      %p55 = pneg %p49
      %p56 = scmp.eq.s32.totalorder %s26, 3
      %p57 = por %p55, %p56
      %p58 = scmp.ne.s32.totalorder %s50, %s53
      %p59 = scmp.eq.s32.totalorder %s26, 0
      %p60 = por %p58, %p59
      %p61 = scmp.ne.s32.totalorder %s50, %s53
      %p62 = scmp.eq.s32.totalorder %s31, 3
      %p63 = por %p61, %p62
      %p64 = scmp.ne.s32.totalorder %s53, %s54
      %p65 = scmp.eq.s32.totalorder %s31, 0
      %p66 = por %p64, %p65
      %p67 = scmp.ne.s32.totalorder %s53, %s54
      %p68 = scmp.eq.s32.totalorder %s32, 3
      %p69 = por %p67, %p68
      %p71 = scmp.ne.s32.totalorder %s54, %s70
      %p72 = scmp.eq.s32.totalorder %s32, 0
      %p73 = por %p71, %p72
      %s75 = sadd.s32 %s74, 1
      %p78 = scmp.eq.s32.totalorder %s26, 3
      %p79 = scmp.ne.s32.totalorder %s74, %s76
      %p80 = scmp.eq.s32.totalorder %s26, 0
      %p81 = por %p79, %p80
      %p82 = scmp.ne.s32.totalorder %s74, %s76
      %p83 = scmp.eq.s32.totalorder %s31, 3
      %p84 = por %p82, %p83
      %p85 = scmp.ne.s32.totalorder %s76, %s77
      %p86 = scmp.eq.s32.totalorder %s31, 0
      %p87 = por %p85, %p86
      %p88 = scmp.ne.s32.totalorder %s76, %s77
      %p89 = scmp.eq.s32.totalorder %s32, 3
      %p90 = por %p88, %p89
      %p92 = scmp.ne.s32.totalorder %s77, %s91
      %p93 = scmp.eq.s32.totalorder %s32, 0
      %p94 = por %p92, %p93
      %s96 = sadd.s32 %s95, 1
      %p99 = scmp.eq.s32.totalorder %s26, 3
      %p100 = scmp.ne.s32.totalorder %s95, %s97
      %p101 = scmp.eq.s32.totalorder %s26, 0
      %p102 = por %p100, %p101
      %p103 = scmp.ne.s32.totalorder %s95, %s97
      %p104 = scmp.eq.s32.totalorder %s31, 3
      %p105 = por %p103, %p104
      %p106 = scmp.ne.s32.totalorder %s97, %s98
      %p107 = scmp.eq.s32.totalorder %s31, 0
      %p108 = por %p106, %p107
      %p109 = scmp.ne.s32.totalorder %s97, %s98
      %p110 = scmp.eq.s32.totalorder %s32, 3
      %p111 = por %p109, %p110
      %p113 = scmp.ne.s32.totalorder %s98, %s112
      %p114 = scmp.eq.s32.totalorder %s32, 0
      %p115 = por %p113, %p114
      %s117 = sadd.s32 %s116, 1
      %p120 = scmp.eq.s32.totalorder %s26, 3
      %p121 = scmp.ne.s32.totalorder %s116, %s118
      %p122 = scmp.eq.s32.totalorder %s26, 0
      %p123 = por %p121, %p122
      %p124 = scmp.ne.s32.totalorder %s116, %s118
      %p125 = scmp.eq.s32.totalorder %s31, 3
      %p126 = por %p124, %p125
      %p127 = scmp.ne.s32.totalorder %s118, %s119
      %p128 = scmp.eq.s32.totalorder %s31, 0
      %p129 = por %p127, %p128
      %p130 = scmp.ne.s32.totalorder %s118, %s119
      %p131 = scmp.eq.s32.totalorder %s32, 3
      %p132 = por %p130, %p131
      %p134 = scmp.ne.s32.totalorder %s119, %s133
      %p135 = scmp.eq.s32.totalorder %s32, 0
      %p136 = por %p134, %p135
      %s138 = sadd.s32 %s137, 1
      %p141 = scmp.eq.s32.totalorder %s26, 3
      %p142 = scmp.ne.s32.totalorder %s137, %s139
      %p143 = scmp.eq.s32.totalorder %s26, 0
      %p144 = por %p142, %p143
      %p145 = scmp.ne.s32.totalorder %s137, %s139
      %p146 = scmp.eq.s32.totalorder %s31, 3
      %p147 = por %p145, %p146
      %p148 = scmp.ne.s32.totalorder %s139, %s140
      %p149 = scmp.eq.s32.totalorder %s31, 0
      %p150 = por %p148, %p149
      %p151 = scmp.ne.s32.totalorder %s139, %s140
      %p152 = scmp.eq.s32.totalorder %s32, 3
      %p153 = por %p151, %p152
      %p155 = scmp.ne.s32.totalorder %s140, %s154
      %p156 = scmp.eq.s32.totalorder %s32, 0
      %p157 = por %p155, %p156
      %s159 = sadd.s32 %s158, 1
      %p162 = scmp.eq.s32.totalorder %s26, 3
      %p163 = scmp.ne.s32.totalorder %s158, %s160
      %p164 = scmp.eq.s32.totalorder %s26, 0
      %p165 = por %p163, %p164
      %p166 = scmp.ne.s32.totalorder %s158, %s160
      %p167 = scmp.eq.s32.totalorder %s31, 3
      %p168 = por %p166, %p167
      %p169 = scmp.ne.s32.totalorder %s160, %s161
      %p170 = scmp.eq.s32.totalorder %s31, 0
      %p171 = por %p169, %p170
      %p172 = scmp.ne.s32.totalorder %s160, %s161
      %p173 = scmp.eq.s32.totalorder %s32, 3
      %p174 = por %p172, %p173
      %p176 = scmp.ne.s32.totalorder %s161, %s175
      %p177 = scmp.eq.s32.totalorder %s32, 0
      %p178 = por %p176, %p177
      %s180 = sadd.s32 %s179, 1
      %p183 = scmp.eq.s32.totalorder %s26, 3
      %p184 = scmp.ne.s32.totalorder %s179, %s181
      %p185 = scmp.eq.s32.totalorder %s26, 0
      %p186 = por %p184, %p185
      %p187 = scmp.ne.s32.totalorder %s179, %s181
      %p188 = scmp.eq.s32.totalorder %s31, 3
      %p189 = por %p187, %p188
      %p190 = scmp.ne.s32.totalorder %s181, %s182
      %p191 = scmp.eq.s32.totalorder %s31, 0
      %p192 = por %p190, %p191
      %p193 = scmp.ne.s32.totalorder %s181, %s182
      %p194 = scmp.eq.s32.totalorder %s32, 3
      %p195 = por %p193, %p194
      %p197 = scmp.ne.s32.totalorder %s182, %s196
      %p198 = scmp.eq.s32.totalorder %s32, 0
      %p199 = por %p197, %p198
      %s201 = sadd.s32 %s200, 1
      %p204 = scmp.eq.s32.totalorder %s26, 3
      %p205 = scmp.ne.s32.totalorder %s200, %s202
      %p206 = scmp.eq.s32.totalorder %s26, 0
      %p207 = por %p205, %p206
      %p208 = scmp.ne.s32.totalorder %s200, %s202
      %p209 = scmp.eq.s32.totalorder %s31, 3
      %p210 = por %p208, %p209
      %p211 = scmp.ne.s32.totalorder %s202, %s203
      %p212 = scmp.eq.s32.totalorder %s31, 0
      %p213 = por %p211, %p212
      %p214 = scmp.ne.s32.totalorder %s202, %s203
      %p215 = scmp.eq.s32.totalorder %s32, 3
      %p216 = por %p214, %p215
      %p218 = scmp.ne.s32.totalorder %s203, %s217
      %p219 = scmp.eq.s32.totalorder %s32, 0
      %p220 = por %p218, %p219
      %s222 = sadd.s32 %s221, 1
      %p225 = scmp.eq.s32.totalorder %s26, 3
      %p226 = scmp.ne.s32.totalorder %s221, %s223
      %p227 = scmp.eq.s32.totalorder %s26, 0
      %p228 = por %p226, %p227
      %p229 = scmp.ne.s32.totalorder %s221, %s223
      %p230 = scmp.eq.s32.totalorder %s31, 3
      %p231 = por %p229, %p230
      %p232 = scmp.ne.s32.totalorder %s223, %s224
      %p233 = scmp.eq.s32.totalorder %s31, 0
      %p234 = por %p232, %p233
      %p235 = scmp.ne.s32.totalorder %s223, %s224
      %p236 = scmp.eq.s32.totalorder %s32, 3
      %p237 = por %p235, %p236
      %p239 = scmp.ne.s32.totalorder %s224, %s238
      %p240 = scmp.eq.s32.totalorder %s32, 0
      %p241 = por %p239, %p240
      %s243 = sadd.s32 %s242, 1
      %p246 = scmp.eq.s32.totalorder %s26, 3
      %p247 = scmp.ne.s32.totalorder %s242, %s244
      %p248 = scmp.eq.s32.totalorder %s26, 0
      %p249 = por %p247, %p248
      %p250 = scmp.ne.s32.totalorder %s242, %s244
      %p251 = scmp.eq.s32.totalorder %s31, 3
      %p252 = por %p250, %p251
      %p253 = scmp.ne.s32.totalorder %s244, %s245
      %p254 = scmp.eq.s32.totalorder %s31, 0
      %p255 = por %p253, %p254
      %p256 = scmp.ne.s32.totalorder %s244, %s245
      %p257 = scmp.eq.s32.totalorder %s32, 3
      %p258 = por %p256, %p257
      %p260 = scmp.ne.s32.totalorder %s245, %s259
      %p261 = scmp.eq.s32.totalorder %s32, 0
      %p262 = por %p260, %p261
      %s264 = sadd.s32 %s263, 1
      %p267 = scmp.eq.s32.totalorder %s26, 3
      %p268 = scmp.ne.s32.totalorder %s263, %s265
      %p269 = scmp.eq.s32.totalorder %s26, 0
      %p270 = por %p268, %p269
      %p271 = scmp.ne.s32.totalorder %s263, %s265
      %p272 = scmp.eq.s32.totalorder %s31, 3
      %p273 = por %p271, %p272
      %p274 = scmp.ne.s32.totalorder %s265, %s266
      %p275 = scmp.eq.s32.totalorder %s31, 0
      %p276 = por %p274, %p275
      %p277 = scmp.ne.s32.totalorder %s265, %s266
      %p278 = scmp.eq.s32.totalorder %s32, 3
      %p279 = por %p277, %p278
      %p281 = scmp.ne.s32.totalorder %s266, %s280
      %p282 = scmp.eq.s32.totalorder %s32, 0
      %p283 = por %p281, %p282
      %s285 = sadd.s32 %s284, 1
      %p288 = scmp.eq.s32.totalorder %s26, 3
      %p289 = scmp.ne.s32.totalorder %s284, %s286
      %p290 = scmp.eq.s32.totalorder %s26, 0
      %p291 = por %p289, %p290
      %p292 = scmp.ne.s32.totalorder %s284, %s286
      %p293 = scmp.eq.s32.totalorder %s31, 3
      %p294 = por %p292, %p293
      %p295 = scmp.ne.s32.totalorder %s286, %s287
      %p296 = scmp.eq.s32.totalorder %s31, 0
      %p297 = por %p295, %p296
      %p298 = scmp.ne.s32.totalorder %s286, %s287
      %p299 = scmp.eq.s32.totalorder %s32, 3
      %p300 = por %p298, %p299
      %p302 = scmp.ne.s32.totalorder %s287, %s301
      %p303 = scmp.eq.s32.totalorder %s32, 0
      %p304 = por %p302, %p303
      %s306 = sadd.s32 %s305, 1
      %p309 = scmp.eq.s32.totalorder %s26, 3
      %p310 = scmp.ne.s32.totalorder %s305, %s307
      %p311 = scmp.eq.s32.totalorder %s26, 0
      %p312 = por %p310, %p311
      %p313 = scmp.ne.s32.totalorder %s305, %s307
      %p314 = scmp.eq.s32.totalorder %s31, 3
      %p315 = por %p313, %p314
      %p316 = scmp.ne.s32.totalorder %s307, %s308
      %p317 = scmp.eq.s32.totalorder %s31, 0
      %p318 = por %p316, %p317
      %p319 = scmp.ne.s32.totalorder %s307, %s308
      %p320 = scmp.eq.s32.totalorder %s32, 3
      %p321 = por %p319, %p320
      %p323 = scmp.ne.s32.totalorder %s308, %s322
      %p324 = scmp.eq.s32.totalorder %s32, 0
      %p325 = por %p323, %p324
      %s327 = sadd.s32 %s326, 1
      %p330 = scmp.eq.s32.totalorder %s26, 3
      %p331 = scmp.ne.s32.totalorder %s326, %s328
      %p332 = scmp.eq.s32.totalorder %s26, 0
      %p333 = por %p331, %p332
      %p334 = scmp.ne.s32.totalorder %s326, %s328
      %p335 = scmp.eq.s32.totalorder %s31, 3
      %p336 = por %p334, %p335
      %p337 = scmp.ne.s32.totalorder %s328, %s329
      %p338 = scmp.eq.s32.totalorder %s31, 0
      %p339 = por %p337, %p338
      %p340 = scmp.ne.s32.totalorder %s328, %s329
      %p341 = scmp.eq.s32.totalorder %s32, 3
      %p342 = por %p340, %p341
      %p344 = scmp.ne.s32.totalorder %s329, %s343
      %p345 = scmp.eq.s32.totalorder %s32, 0
      %p346 = por %p344, %p345
      %s347 = ssub.s32 %s33, %s45
      %s348 = ssub.s32 %s34, %s41
      %s349 = sor.u32 %s347, %s348
      %p350 = scmp.eq.s32.totalorder %s349, 0
      %s352 = sadd.s32 %s351, 1
      %s353 = scalar_select %p350, %s351, %s352
      %p356 = pneg %p350
      %p357 = scmp.eq.s32.totalorder %s26, 3
      %p358 = por %p356, %p357
      %p359 = scmp.ne.s32.totalorder %s351, %s354
      %p360 = scmp.eq.s32.totalorder %s26, 0
      %p361 = por %p359, %p360
      %p362 = scmp.ne.s32.totalorder %s351, %s354
      %p363 = scmp.eq.s32.totalorder %s31, 3
      %p364 = por %p362, %p363
      %p365 = scmp.ne.s32.totalorder %s354, %s355
      %p366 = scmp.eq.s32.totalorder %s31, 0
      %p367 = por %p365, %p366
      %p368 = scmp.ne.s32.totalorder %s354, %s355
      %p369 = scmp.eq.s32.totalorder %s32, 3
      %p370 = por %p368, %p369
      %p372 = scmp.ne.s32.totalorder %s355, %s371
      %p373 = scmp.eq.s32.totalorder %s32, 0
      %p374 = por %p372, %p373
      %p375 = scmp.le.s32.totalorder 1, %s26
      %p376 = scmp.lt.s32.totalorder %s26, 5
      %p377 = pnand %p375, %p376
      %p378 = pneg %p377
      // Predicated region
      $region9: #{tpu_custom_call.1} parent=5 // pred_check
        _
      $region10: #{tpu_custom_call.1} parent=5 // pred_check_branch
        %380 = sbr.rel (%p377) target = $region12
      $region11: #{tpu_custom_call.1} parent=5 // pred_region
        %s381 = ssub.s32 %s26, 1
        // Predicated region
        $region13: #{tpu_custom_call.1} parent=11 // pred_check
          %p382 = pneg %p87
        $region14: #{tpu_custom_call.1} parent=11 // pred_check_branch
          %384 = sbr.rel (%p382) target = $region16
        $region15: #{tpu_custom_call.1} parent=11 // pred_region
          _
        $region16: #{tpu_custom_call.1} parent=11 // pred_fallthru
          _
        // Predicated region
        $region17: #{tpu_custom_call.1} parent=11 // pred_check
          %p385 = pneg %p108
        $region18: #{tpu_custom_call.1} parent=11 // pred_check_branch
          %387 = sbr.rel (%p385) target = $region20
        $region19: #{tpu_custom_call.1} parent=11 // pred_region
          _
        $region20: #{tpu_custom_call.1} parent=11 // pred_fallthru
          _
        // Predicated region
        $region21: #{tpu_custom_call.1} parent=11 // pred_check
          %p388 = pneg %p129
        $region22: #{tpu_custom_call.1} parent=11 // pred_check_branch
          %390 = sbr.rel (%p388) target = $region24
        $region23: #{tpu_custom_call.1} parent=11 // pred_region
          _
        $region24: #{tpu_custom_call.1} parent=11 // pred_fallthru
          _
        // Predicated region
        $region25: #{tpu_custom_call.1} parent=11 // pred_check
          %p391 = pneg %p150
        $region26: #{tpu_custom_call.1} parent=11 // pred_check_branch
          %393 = sbr.rel (%p391) target = $region28
        $region27: #{tpu_custom_call.1} parent=11 // pred_region
          _
        $region28: #{tpu_custom_call.1} parent=11 // pred_fallthru
          _
        // Predicated region
        $region29: #{tpu_custom_call.1} parent=11 // pred_check
          %p394 = pneg %p171
        $region30: #{tpu_custom_call.1} parent=11 // pred_check_branch
          %396 = sbr.rel (%p394) target = $region32
        $region31: #{tpu_custom_call.1} parent=11 // pred_region
          _
        $region32: #{tpu_custom_call.1} parent=11 // pred_fallthru
          _
        // Predicated region
        $region33: #{tpu_custom_call.1} parent=11 // pred_check
          %p397 = pneg %p192
        $region34: #{tpu_custom_call.1} parent=11 // pred_check_branch
          %399 = sbr.rel (%p397) target = $region36
        $region35: #{tpu_custom_call.1} parent=11 // pred_region
          _
        $region36: #{tpu_custom_call.1} parent=11 // pred_fallthru
          _
        // Predicated region
        $region37: #{tpu_custom_call.1} parent=11 // pred_check
          %p400 = pneg %p213
        $region38: #{tpu_custom_call.1} parent=11 // pred_check_branch
          %402 = sbr.rel (%p400) target = $region40
        $region39: #{tpu_custom_call.1} parent=11 // pred_region
          _
        $region40: #{tpu_custom_call.1} parent=11 // pred_fallthru
          _
        // Predicated region
        $region41: #{tpu_custom_call.1} parent=11 // pred_check
          %p403 = pneg %p234
        $region42: #{tpu_custom_call.1} parent=11 // pred_check_branch
          %405 = sbr.rel (%p403) target = $region44
        $region43: #{tpu_custom_call.1} parent=11 // pred_region
          _
        $region44: #{tpu_custom_call.1} parent=11 // pred_fallthru
          _
        // Predicated region
        $region45: #{tpu_custom_call.1} parent=11 // pred_check
          %p406 = pneg %p255
        $region46: #{tpu_custom_call.1} parent=11 // pred_check_branch
          %408 = sbr.rel (%p406) target = $region48
        $region47: #{tpu_custom_call.1} parent=11 // pred_region
          _
        $region48: #{tpu_custom_call.1} parent=11 // pred_fallthru
          _
        // Predicated region
        $region49: #{tpu_custom_call.1} parent=11 // pred_check
          %p409 = pneg %p276
        $region50: #{tpu_custom_call.1} parent=11 // pred_check_branch
          %411 = sbr.rel (%p409) target = $region52
        $region51: #{tpu_custom_call.1} parent=11 // pred_region
          _
        $region52: #{tpu_custom_call.1} parent=11 // pred_fallthru
          _
        // Predicated region
        $region53: #{tpu_custom_call.1} parent=11 // pred_check
          %p412 = pneg %p297
        $region54: #{tpu_custom_call.1} parent=11 // pred_check_branch
          %414 = sbr.rel (%p412) target = $region56
        $region55: #{tpu_custom_call.1} parent=11 // pred_region
          _
        $region56: #{tpu_custom_call.1} parent=11 // pred_fallthru
          _
        // Predicated region
        $region57: #{tpu_custom_call.1} parent=11 // pred_check
          %p415 = pneg %p318
        $region58: #{tpu_custom_call.1} parent=11 // pred_check_branch
          %417 = sbr.rel (%p415) target = $region60
        $region59: #{tpu_custom_call.1} parent=11 // pred_region
          _
        $region60: #{tpu_custom_call.1} parent=11 // pred_fallthru
          _
        // Predicated region
        $region61: #{tpu_custom_call.1} parent=11 // pred_check
          %p418 = pneg %p339
        $region62: #{tpu_custom_call.1} parent=11 // pred_check_branch
          %420 = sbr.rel (%p418) target = $region64
        $region63: #{tpu_custom_call.1} parent=11 // pred_region
          _
        $region64: #{tpu_custom_call.1} parent=11 // pred_fallthru
          _
      $region12: #{tpu_custom_call.1} parent=5 // pred_fallthru
        _
      %p421 = scmp.lt.s32.totalorder %s26, 4
      // Predicated region
      $region65: #{tpu_custom_call.1} parent=5 // pred_check
        %p422 = pneg %p421
      $region66: #{tpu_custom_call.1} parent=5 // pred_check_branch
        %424 = sbr.rel (%p422) target = $region68
      $region67: #{tpu_custom_call.1} parent=5 // pred_region
        // Predicated region
        $region69: #{tpu_custom_call.1} parent=67 // pred_check
          %p425 = pneg %p60
        $region70: #{tpu_custom_call.1} parent=67 // pred_check_branch
          %427 = sbr.rel (%p425) target = $region72
        $region71: #{tpu_custom_call.1} parent=67 // pred_region
          %s428 = sand.u32 %s50, 1
          %s429 = scalar_lea.sflag [#allocation5], %s428
          %s430 = sand.u32 %s50, 1
          %s431 = smul.addr %s430, 8
          %s432 = scalar_lea.vmem [#allocation4], %s431
          %s434 = ssub.s32 128, 128
          %435 = vsyncadd %s429, %s434
          %s436 = smul.addr %s33, 2
          %s437 = sadd.s32 %s34, %s436
          %s438 = smul.addr %s437, 128
          %s439 = scalar_lea.hbm %s0, %s438
          %s441 = sshll.u32 %s432, 4
          %s442 = int_to_ptr.vmem [resolvable:$true] %s441
          %444 = dma.hbm_to_vmem [thread:$0]  %s439, 128, %s442, %s429
        $region72: #{tpu_custom_call.1} parent=67 // pred_fallthru
          _
      $region68: #{tpu_custom_call.1} parent=5 // pred_fallthru
        _
      %p445 = scmp.le.s32.totalorder 1, %s26
      %p446 = scmp.lt.s32.totalorder %s26, 5
      %p447 = pnand %p445, %p446
      %p448 = pneg %p447
      // Predicated region
      $region73: #{tpu_custom_call.1} parent=5 // pred_check
        _
      $region74: #{tpu_custom_call.1} parent=5 // pred_check_branch
        %450 = sbr.rel (%p447) target = $region76
      $region75: #{tpu_custom_call.1} parent=5 // pred_region
        %s451 = ssub.s32 %s26, 1
        %s452 = sand.u32 %s53, 1
        %s453 = scalar_lea.sflag [#allocation5], %s452
        %s454 = sand.u32 %s53, 1
        %s455 = smul.addr %s454, 8
        %s456 = scalar_lea.vmem [#allocation4], %s455
        // Predicated region
        $region77: #{tpu_custom_call.1} parent=75 // pred_check
          %p457 = pneg %p66
        $region78: #{tpu_custom_call.1} parent=75 // pred_check_branch
          %459 = sbr.rel (%p457) target = $region80
        $region79: #{tpu_custom_call.1} parent=75 // pred_region
          %460 = dma.done %s453, 128
        $region80: #{tpu_custom_call.1} parent=75 // pred_fallthru
          _
        %s461 = sand.u32 %s53, 1
        %s462 = scalar_lea.sflag [#allocation5], %s461
        %s463 = sand.u32 %s53, 1
        %s464 = smul.addr %s463, 8
        %s465 = scalar_lea.vmem [#allocation4], %s464
        %p466 = pneg %p66
        %p467 = pneg %p63
        %p468 = pneg %p87
        %p469 = pneg %p84
        %p470 = pneg %p108
        %p471 = pneg %p105
        %p472 = pneg %p129
        %p473 = pneg %p126
        %p474 = pneg %p150
        %p475 = pneg %p147
        %p476 = pneg %p171
        %p477 = pneg %p168
        %p478 = pneg %p192
        %p479 = pneg %p189
        %p480 = pneg %p213
        %p481 = pneg %p210
        %p482 = pneg %p234
        %p483 = pneg %p231
        %p484 = pneg %p255
        %p485 = pneg %p252
        %p486 = pneg %p276
        %p487 = pneg %p273
        %p488 = pneg %p297
        %p489 = pneg %p294
        %p490 = pneg %p318
        %p491 = pneg %p315
        %p492 = pneg %p339
        %p493 = pneg %p336
        %p494 = pneg %p367
        %p495 = pneg %p364
        %s496 = sand.u32 %s354, 1
        %s497 = scalar_lea.sflag [#allocation6], %s496
        %s498 = sand.u32 %s354, 1
        %s499 = smul.addr %s498, 8
        %s500 = scalar_lea.vmem [#allocation7], %s499
        %p502 = scmp.eq.s32.totalorder %s36, 0
        // Predicated region
        $region81: #{tpu_custom_call.1} parent=75 // pred_check
          %p503 = pneg %p502
        $region82: #{tpu_custom_call.1} parent=75 // pred_check_branch
          %505 = sbr.rel (%p503) target = $region84
        $region83: #{tpu_custom_call.1} parent=75 // pred_region
          %vm506 = vcmask 261120
          %507 = vst.msk [vmem:[#allocation2] sm:$0xff] %vm506, 0.0
          %vm508 = vcmask 392192
          %509 = vst.msk [vmem:[#allocation3] sm:$0xff] %vm508, 0.0
          %510 = vst.msk [vmem:[#allocation3 + $0x8] sm:$0xff] %vm508, 0.0
        $region84: #{tpu_custom_call.1} parent=75 // pred_fallthru
          _
        %v511 = vld [vmem:[%s456] sm:$0xff]
        %v512 = vpack.c.bf16 %v511, %v511
        %v513 = vld [vmem:[%s1] sm:$0xf]
        %v514 = vld [vmem:[%s1 + $0x4] sm:$0xf]
        %v515 = vld [vmem:[%s2] sm:$0x1]
        %v517 = vlaneseq
        %v518 = vshrl.u32 %v517, 7
        %v519 = vsub.s32 0, %v518
        %v520 = vrot.slane %v515, %v519
        %v524 = vunpack.c.l.b16 %v513
        %v525 = vunpack.c.l.b16 %v514
        %v526 = vpack.c.b16 %v525, %v524
        %vm528 = vcmask 130048
        %v530 = vsel %vm528, %v512, 0
        %532 = vmatprep.subr.bf16.mxu0 0
        %533 = vmatpush1.bf16.msra.mxu0 0
        %534 = vmatprep.subr.bf16.mxu0 0
        %535 = vmatpush1.bf16.msra.mxu0 0
        %536 = vmatprep.subr.bf16.mxu0 0
        %537 = vmatpush1.bf16.msra.mxu0 0
        %538 = vmatprep.subr.bf16.mxu0 0
        %539 = vmatpush1.bf16.msra.mxu0 0
        %540 = vmatprep.subr.bf16.mxu0 0
        %541 = vmatpush1.bf16.msra.mxu0 0
        %542 = vmatprep.subr.bf16.mxu0 0
        %543 = vmatpush1.bf16.msra.mxu0 0
        %544 = vmatprep.subr.bf16.mxu0 0
        %545 = vmatpush1.bf16.msra.mxu0 0
        %546 = vmatprep.subr.bf16.mxu0 0
        %547 = vmatpush1.bf16.msra.mxu0 %v526
        %548 = vmatprep.subr.bf16.mxu0 0
        %549 = vmatpush2.bf16.msra.mxu0 0
        %550 = vmatprep.subr.bf16.mxu0 0
        %551 = vmatpush2.bf16.msra.mxu0 0
        %552 = vmatprep.subr.bf16.mxu0 0
        %553 = vmatpush2.bf16.msra.mxu0 0
        %554 = vmatprep.subr.bf16.mxu0 0
        %555 = vmatpush2.bf16.msra.mxu0 0
        %556 = vmatprep.subr.bf16.mxu0 0
        %557 = vmatpush2.bf16.msra.mxu0 0
        %558 = vmatprep.subr.bf16.mxu0 0
        %559 = vmatpush2.bf16.msra.mxu0 0
        %560 = vmatprep.subr.bf16.mxu0 0
        %561 = vmatpush2.bf16.msra.mxu0 0
        %562 = vmatprep.subr.bf16.mxu0 0
        %563 = vmatpush2.bf16.msra.mxu0 0
        %564 = vmatprep.mubr.bf16.mxu0 0
        %565 = vmatmul.mubr.bf16.gmra.mxu0 %v530
        %v566 = vpop.f32.mrf.mxu0
        %v567 = vadd.f32 %v520, %v566
        %v568 = vpop.f32.mrf.mxu0
        %v569 = vpop.f32.mrf.mxu0
        %v570 = vpop.f32.mrf.mxu0
        %571 = vdwg.mxu0
        %v572 = vld [vmem:[%s3] sm:$0xf]
        %v573 = vld [vmem:[%s3 + $0x4] sm:$0xf]
        %v574 = vld [vmem:[%s4] sm:$0x1]
        %v576 = vlaneseq
        %v577 = vshrl.u32 %v576, 7
        %v578 = vsub.s32 0, %v577
        %v579 = vrot.slane %v574, %v578
        %v583 = vunpack.c.l.b16 %v572
        %v584 = vunpack.c.l.b16 %v573
        %v585 = vpack.c.b16 %v584, %v583
        %587 = vmatprep.subr.bf16.mxu0 0
        %588 = vmatpush1.bf16.msra.mxu0 0
        %589 = vmatprep.subr.bf16.mxu0 0
        %590 = vmatpush1.bf16.msra.mxu0 0
        %591 = vmatprep.subr.bf16.mxu0 0
        %592 = vmatpush1.bf16.msra.mxu0 0
        %593 = vmatprep.subr.bf16.mxu0 0
        %594 = vmatpush1.bf16.msra.mxu0 0
        %595 = vmatprep.subr.bf16.mxu0 0
        %596 = vmatpush1.bf16.msra.mxu0 0
        %597 = vmatprep.subr.bf16.mxu0 0
        %598 = vmatpush1.bf16.msra.mxu0 0
        %599 = vmatprep.subr.bf16.mxu0 0
        %600 = vmatpush1.bf16.msra.mxu0 0
        %601 = vmatprep.subr.bf16.mxu0 0
        %602 = vmatpush1.bf16.msra.mxu0 %v585
        %603 = vmatprep.subr.bf16.mxu0 0
        %604 = vmatpush2.bf16.msra.mxu0 0
        %605 = vmatprep.subr.bf16.mxu0 0
        %606 = vmatpush2.bf16.msra.mxu0 0
        %607 = vmatprep.subr.bf16.mxu0 0
        %608 = vmatpush2.bf16.msra.mxu0 0
        %609 = vmatprep.subr.bf16.mxu0 0
        %610 = vmatpush2.bf16.msra.mxu0 0
        %611 = vmatprep.subr.bf16.mxu0 0
        %612 = vmatpush2.bf16.msra.mxu0 0
        %613 = vmatprep.subr.bf16.mxu0 0
        %614 = vmatpush2.bf16.msra.mxu0 0
        %615 = vmatprep.subr.bf16.mxu0 0
        %616 = vmatpush2.bf16.msra.mxu0 0
        %617 = vmatprep.subr.bf16.mxu0 0
        %618 = vmatpush2.bf16.msra.mxu0 0
        %619 = vmatprep.mubr.bf16.mxu0 0
        %620 = vmatmul.mubr.bf16.gmra.mxu0 %v530
        %v621 = vpop.f32.mrf.mxu0
        %v622 = vadd.f32 %v579, %v621
        %v623 = vpop.f32.mrf.mxu0
        %v624 = vpop.f32.mrf.mxu0
        %v625 = vpop.f32.mrf.mxu0
        %626 = vdwg.mxu0
        %vm627 = vcmask 392192
        %628 = vst.msk [vmem:[#allocation3 + $0x8] sm:$0xff] %vm627, %v622
        %v629 = vld [vmem:[#allocation3 + $0x5] sm:$0xff]
        %v630 = vld [vmem:[%s5] sm:$0x1]
        %v631 = vlaneseq
        %v632 = vshrl.u32 %v631, 7
        %v633 = vsub.s32 0, %v632
        %v634 = vrot.slane %v630, %v633
        %v635 = vmul.f32 %v629, %v634
        %v636 = vadd.f32 %v635, 0.0
        %v637 = vld [vmem:[#allocation3 + $0x6] sm:$0xff]
        %v638 = vld [vmem:[%s5 + $0x1] sm:$0x1]
        %v639 = vlaneseq
        %v640 = vshrl.u32 %v639, 7
        %v641 = vsub.s32 0, %v640
        %v642 = vrot.slane %v638, %v641
        %v643 = vmul.f32 %v637, %v642
        %v644 = vadd.f32 %v636, %v643
        %v645 = vld [vmem:[#allocation3 + $0x7] sm:$0xff]
        %v646 = vld [vmem:[%s5 + $0x2] sm:$0x1]
        %v647 = vlaneseq
        %v648 = vshrl.u32 %v647, 7
        %v649 = vsub.s32 0, %v648
        %v650 = vrot.slane %v646, %v649
        %v651 = vmul.f32 %v645, %v650
        %v652 = vadd.f32 %v644, %v651
        %v653 = vld [vmem:[#allocation3 + $0x8] sm:$0xff]
        %v654 = vld [vmem:[%s5 + $0x3] sm:$0x1]
        %v655 = vlaneseq
        %v656 = vshrl.u32 %v655, 7
        %v657 = vsub.s32 0, %v656
        %v658 = vrot.slane %v654, %v657
        %v659 = vmul.f32 %v653, %v658
        %v660 = vadd.f32 %v652, %v659
        %v661 = vld [vmem:[%s6] sm:$0x1]
        %v663 = vlaneseq
        %v664 = vshrl.u32 %v663, 7
        %v665 = vsub.s32 0, %v664
        %v666 = vrot.slane %v661, %v665
        %v668 = vadd.f32 %v660, %v666
        %669 = vst.msk [vmem:[#allocation3] sm:$0xff] %vm627, %v622
        %v670 = vsub.f32 0.0, %v668
        %v671 = vmul.f32 %v670, 1.442695
        %v672 = vpow.pop %v671
        %v673 = vadd.f32 %v672, 1.0
        %v674 = vrcp.pop %v673
        %v675 = vmul.f32 %v668, %v674
        %v676 = vld [vmem:[%s7] sm:$0x1]
        %v678 = vlaneseq
        %v679 = vshrl.u32 %v678, 7
        %v680 = vsub.s32 0, %v679
        %v681 = vrot.slane %v676, %v680
        %682 = vrot.lane.b32.xlu0 %v681, 48
        %v683 = vpop.permute.xlu0 %682
        %v685 = vadd.f32 %v622, %v683
        %v686 = vmax.f32 %v685, 0.0
        %v687 = vand.u32 2147483647, %v685
        %v688 = vsub.f32 0.0, %v687
        %v689 = vmul.f32 %v688, 1.442695
        %v690 = vpow.pop %v689
        %v691 = vadd.f32 %v690, 1.0
        %v692 = vlog2.pop %v691
        %v693 = vmul.f32 %v692, 0.6931472
        %v694 = vadd.f32 %v686, %v693
        %v695 = vld [vmem:[%s8] sm:$0x1]
        %v696 = vmul.f32 %v695, 1.442695
        %v697 = vpow.pop %v696
        %v698 = vsub.f32 0.0, %v697
        %v700 = vlaneseq
        %v701 = vshrl.u32 %v700, 7
        %v702 = vsub.s32 0, %v701
        %v703 = vrot.slane %v698, %v702
        %706 = vrot.lane.b32.xlu0 %v694, 80
        %v707 = vpop.permute.xlu0 %706
        %v709 = vmul.f32 %v703, %v707
        %v710 = vlaneseq
        %v711 = vshrl.u32 %v710, 7
        %v712 = vlaneseq
        %v713 = vand.u32 %v712, 127
        %vm714 = vcmp.ge.s32.totalorder %v711, %v713
        %v715 = vsel %vm714, 1, 0
        %v716 = vcvt.s32.f32 %v715
        %vm717 = vcmask 64512
        %v719 = vsel %vm717, %v716, 0
        %721 = vmatprep.subr.mxu0 0.0
        %722 = vmatpush1.msra.mxu0 0.0
        %723 = vmatprep.subr.mxu0 0.0
        %724 = vmatpush1.msra.mxu0 0.0
        %725 = vmatprep.subr.mxu0 0.0
        %726 = vmatpush1.msra.mxu0 0.0
        %727 = vmatprep.subr.mxu0 0.0
        %728 = vmatpush1.msra.mxu0 0.0
        %729 = vmatprep.subr.mxu0 0.0
        %730 = vmatpush1.msra.mxu0 0.0
        %731 = vmatprep.subr.mxu0 0.0
        %732 = vmatpush1.msra.mxu0 0.0
        %733 = vmatprep.subr.mxu0 0.0
        %734 = vmatpush1.msra.mxu0 0.0
        %735 = vmatprep.subr.mxu0 0.0
        %736 = vmatpush1.msra.mxu0 0.0
        %737 = vmatprep.subr.mxu0 0.0
        %738 = vmatpush1.msra.mxu0 0.0
        %739 = vmatprep.subr.mxu0 0.0
        %740 = vmatpush1.msra.mxu0 0.0
        %741 = vmatprep.subr.mxu0 0.0
        %742 = vmatpush1.msra.mxu0 0.0
        %743 = vmatprep.subr.mxu0 0.0
        %744 = vmatpush1.msra.mxu0 0.0
        %745 = vmatprep.subr.mxu0 0.0
        %746 = vmatpush1.msra.mxu0 0.0
        %747 = vmatprep.subr.mxu0 0.0
        %748 = vmatpush1.msra.mxu0 0.0
        %749 = vmatprep.subr.mxu0 0.0
        %750 = vmatpush1.msra.mxu0 0.0
        %751 = vmatprep.subr.mxu0 0.0
        %752 = vmatpush1.msra.mxu0 %v709
        %753 = vmatprep.subr.mxu0 0.0
        %754 = vmatpush2.msra.mxu0 0.0
        %755 = vmatprep.subr.mxu0 0.0
        %756 = vmatpush2.msra.mxu0 0.0
        %757 = vmatprep.subr.mxu0 0.0
        %758 = vmatpush2.msra.mxu0 0.0
        %759 = vmatprep.subr.mxu0 0.0
        %760 = vmatpush2.msra.mxu0 0.0
        %761 = vmatprep.subr.mxu0 0.0
        %762 = vmatpush2.msra.mxu0 0.0
        %763 = vmatprep.subr.mxu0 0.0
        %764 = vmatpush2.msra.mxu0 0.0
        %765 = vmatprep.subr.mxu0 0.0
        %766 = vmatpush2.msra.mxu0 0.0
        %767 = vmatprep.subr.mxu0 0.0
        %768 = vmatpush2.msra.mxu0 0.0
        %769 = vmatprep.subr.mxu0 0.0
        %770 = vmatpush2.msra.mxu0 0.0
        %771 = vmatprep.subr.mxu0 0.0
        %772 = vmatpush2.msra.mxu0 0.0
        %773 = vmatprep.subr.mxu0 0.0
        %774 = vmatpush2.msra.mxu0 0.0
        %775 = vmatprep.subr.mxu0 0.0
        %776 = vmatpush2.msra.mxu0 0.0
        %777 = vmatprep.subr.mxu0 0.0
        %778 = vmatpush2.msra.mxu0 0.0
        %779 = vmatprep.subr.mxu0 0.0
        %780 = vmatpush2.msra.mxu0 0.0
        %781 = vmatprep.subr.mxu0 0.0
        %782 = vmatpush2.msra.mxu0 0.0
        %783 = vmatprep.subr.mxu0 0.0
        %784 = vmatpush2.msra.mxu0 0.0
        %785 = vmatprep.mubr.f32.mxu0 0.0
        %786 = vmatmul.mubr.f32.gmra.mxu0 %v719
        %v787 = vpop.f32.mrf.mxu0
        %v788 = vadd.f32 0.0, %v787
        %v789 = vpop.f32.mrf.mxu0
        %790 = vdwg.mxu0
        %v791 = vld [vmem:[%s9] sm:$0x3]
        %v792 = vpack.c.bf16 %v694, %v694
        %794 = vrot.lane.b32.xlu0 %v792, 80
        %v795 = vpop.permute.xlu0 %794
        %vm796 = vcmask 31744
        %v798 = vsel %vm796, %v795, 0
        %vm800 = vcmask 1041408
        %v802 = vsel %vm800, %v791, 0
        %804 = vmatprep.subr.bf16.mxu0 0
        %805 = vmatpush1.bf16.msra.mxu0 0
        %806 = vmatprep.subr.bf16.mxu0 0
        %807 = vmatpush1.bf16.msra.mxu0 0
        %808 = vmatprep.subr.bf16.mxu0 0
        %809 = vmatpush1.bf16.msra.mxu0 0
        %810 = vmatprep.subr.bf16.mxu0 0
        %811 = vmatpush1.bf16.msra.mxu0 0
        %812 = vmatprep.subr.bf16.mxu0 0
        %813 = vmatpush1.bf16.msra.mxu0 0
        %814 = vmatprep.subr.bf16.mxu0 0
        %815 = vmatpush1.bf16.msra.mxu0 0
        %816 = vmatprep.subr.bf16.mxu0 0
        %817 = vmatpush1.bf16.msra.mxu0 0
        %818 = vmatprep.subr.bf16.mxu0 0
        %819 = vmatpush1.bf16.msra.mxu0 %v802
        %820 = vmatprep.subr.bf16.mxu0 0
        %821 = vmatpush2.bf16.msra.mxu0 0
        %822 = vmatprep.subr.bf16.mxu0 0
        %823 = vmatpush2.bf16.msra.mxu0 0
        %824 = vmatprep.subr.bf16.mxu0 0
        %825 = vmatpush2.bf16.msra.mxu0 0
        %826 = vmatprep.subr.bf16.mxu0 0
        %827 = vmatpush2.bf16.msra.mxu0 0
        %828 = vmatprep.subr.bf16.mxu0 0
        %829 = vmatpush2.bf16.msra.mxu0 0
        %830 = vmatprep.subr.bf16.mxu0 0
        %831 = vmatpush2.bf16.msra.mxu0 0
        %832 = vmatprep.subr.bf16.mxu0 0
        %833 = vmatpush2.bf16.msra.mxu0 0
        %834 = vmatprep.subr.bf16.mxu0 0
        %835 = vmatpush2.bf16.msra.mxu0 0
        %836 = vmatprep.mubr.bf16.mxu0 0
        %837 = vmatmul.mubr.bf16.gmra.mxu0 %v798
        %v838 = vpop.f32.mrf.mxu0
        %v839 = vadd.f32 0.0, %v838
        %v840 = vpop.f32.mrf.mxu0
        %v841 = vpop.f32.mrf.mxu0
        %v842 = vpop.f32.mrf.mxu0
        %843 = vdwg.mxu0
        %v844 = vmul.f32 %v788, 1.442695
        %v845 = vpow.pop %v844
        %v846 = vpack.c.bf16 %v845, %v845
        %v848 = vsel %vm796, %v846, 0
        %850 = vmatprep.subr.bf16.mxu0 0
        %851 = vmatpush1.bf16.msra.mxu0 0
        %852 = vmatprep.subr.bf16.mxu0 0
        %853 = vmatpush1.bf16.msra.mxu0 0
        %854 = vmatprep.subr.bf16.mxu0 0
        %855 = vmatpush1.bf16.msra.mxu0 0
        %856 = vmatprep.subr.bf16.mxu0 0
        %857 = vmatpush1.bf16.msra.mxu0 0
        %858 = vmatprep.subr.bf16.mxu0 0
        %859 = vmatpush1.bf16.msra.mxu0 0
        %860 = vmatprep.subr.bf16.mxu0 0
        %861 = vmatpush1.bf16.msra.mxu0 0
        %862 = vmatprep.subr.bf16.mxu0 0
        %863 = vmatpush1.bf16.msra.mxu0 0
        %864 = vmatprep.subr.bf16.mxu0 0
        %865 = vmatpush1.bf16.msra.mxu0 %v802
        %866 = vmatprep.subr.bf16.mxu0 0
        %867 = vmatpush2.bf16.msra.mxu0 0
        %868 = vmatprep.subr.bf16.mxu0 0
        %869 = vmatpush2.bf16.msra.mxu0 0
        %870 = vmatprep.subr.bf16.mxu0 0
        %871 = vmatpush2.bf16.msra.mxu0 0
        %872 = vmatprep.subr.bf16.mxu0 0
        %873 = vmatpush2.bf16.msra.mxu0 0
        %874 = vmatprep.subr.bf16.mxu0 0
        %875 = vmatpush2.bf16.msra.mxu0 0
        %876 = vmatprep.subr.bf16.mxu0 0
        %877 = vmatpush2.bf16.msra.mxu0 0
        %878 = vmatprep.subr.bf16.mxu0 0
        %879 = vmatpush2.bf16.msra.mxu0 0
        %880 = vmatprep.subr.bf16.mxu0 0
        %881 = vmatpush2.bf16.msra.mxu0 0
        %882 = vmatprep.mubr.bf16.mxu0 0
        %883 = vmatmul.mubr.bf16.gmra.mxu0 %v848
        %v884 = vpop.f32.mrf.mxu0
        %v885 = vadd.f32 0.0, %v884
        %v886 = vpop.f32.mrf.mxu0
        %v887 = vpop.f32.mrf.mxu0
        %v888 = vpop.f32.mrf.mxu0
        %889 = vdwg.mxu0
        %v890 = vsub.f32 0.0, %v788
        %v891 = vmin.f32 %v890, 64.0
        %v892 = vmul.f32 %v891, 1.442695
        %v893 = vpow.pop %v892
        %v894 = vpack.c.bf16 %v893, %v893
        %v896 = vsel %vm796, %v894, 0
        %898 = vmatprep.subr.bf16.mxu0 0
        %899 = vmatpush1.bf16.msra.mxu0 0
        %900 = vmatprep.subr.bf16.mxu0 0
        %901 = vmatpush1.bf16.msra.mxu0 0
        %902 = vmatprep.subr.bf16.mxu0 0
        %903 = vmatpush1.bf16.msra.mxu0 0
        %904 = vmatprep.subr.bf16.mxu0 0
        %905 = vmatpush1.bf16.msra.mxu0 0
        %906 = vmatprep.subr.bf16.mxu0 0
        %907 = vmatpush1.bf16.msra.mxu0 0
        %908 = vmatprep.subr.bf16.mxu0 0
        %909 = vmatpush1.bf16.msra.mxu0 0
        %910 = vmatprep.subr.bf16.mxu0 0
        %911 = vmatpush1.bf16.msra.mxu0 0
        %912 = vmatprep.subr.bf16.mxu0 0
        %913 = vmatpush1.bf16.msra.mxu0 %v802
        %914 = vmatprep.subr.bf16.mxu0 0
        %915 = vmatpush2.bf16.msra.mxu0 0
        %916 = vmatprep.subr.bf16.mxu0 0
        %917 = vmatpush2.bf16.msra.mxu0 0
        %918 = vmatprep.subr.bf16.mxu0 0
        %919 = vmatpush2.bf16.msra.mxu0 0
        %920 = vmatprep.subr.bf16.mxu0 0
        %921 = vmatpush2.bf16.msra.mxu0 0
        %922 = vmatprep.subr.bf16.mxu0 0
        %923 = vmatpush2.bf16.msra.mxu0 0
        %924 = vmatprep.subr.bf16.mxu0 0
        %925 = vmatpush2.bf16.msra.mxu0 0
        %926 = vmatprep.subr.bf16.mxu0 0
        %927 = vmatpush2.bf16.msra.mxu0 0
        %928 = vmatprep.subr.bf16.mxu0 0
        %929 = vmatpush2.bf16.msra.mxu0 0
        %930 = vmatprep.mubr.bf16.mxu0 0
        %931 = vmatmul.mubr.bf16.gmra.mxu0 %v896
        %v932 = vpop.f32.mrf.mxu0
        %v933 = vadd.f32 0.0, %v932
        %v934 = vpop.f32.mrf.mxu0
        %v935 = vpop.f32.mrf.mxu0
        %v936 = vpop.f32.mrf.mxu0
        %937 = vdwg.mxu0
        %v938 = vlaneseq
        %v939 = vshrl.u32 %v938, 7
        %v940 = vsub.s32 7, %v939
        %v941 = vrot.slane %v788, %v940
        %v942 = vsub.f32 %v941, %v788
        %v943 = vmul.f32 %v942, 1.442695
        %v944 = vpow.pop %v943
        %v945 = vpack.c.bf16 %v944, %v944
        %v947 = vsel %vm796, %v945, 0
        %949 = vmatprep.subr.bf16.mxu0 0
        %950 = vmatpush1.bf16.msra.mxu0 0
        %951 = vmatprep.subr.bf16.mxu0 0
        %952 = vmatpush1.bf16.msra.mxu0 0
        %953 = vmatprep.subr.bf16.mxu0 0
        %954 = vmatpush1.bf16.msra.mxu0 0
        %955 = vmatprep.subr.bf16.mxu0 0
        %956 = vmatpush1.bf16.msra.mxu0 0
        %957 = vmatprep.subr.bf16.mxu0 0
        %958 = vmatpush1.bf16.msra.mxu0 0
        %959 = vmatprep.subr.bf16.mxu0 0
        %960 = vmatpush1.bf16.msra.mxu0 0
        %961 = vmatprep.subr.bf16.mxu0 0
        %962 = vmatpush1.bf16.msra.mxu0 0
        %963 = vmatprep.subr.bf16.mxu0 0
        %964 = vmatpush1.bf16.msra.mxu0 %v802
        %965 = vmatprep.subr.bf16.mxu0 0
        %966 = vmatpush2.bf16.msra.mxu0 0
        %967 = vmatprep.subr.bf16.mxu0 0
        %968 = vmatpush2.bf16.msra.mxu0 0
        %969 = vmatprep.subr.bf16.mxu0 0
        %970 = vmatpush2.bf16.msra.mxu0 0
        %971 = vmatprep.subr.bf16.mxu0 0
        %972 = vmatpush2.bf16.msra.mxu0 0
        %973 = vmatprep.subr.bf16.mxu0 0
        %974 = vmatpush2.bf16.msra.mxu0 0
        %975 = vmatprep.subr.bf16.mxu0 0
        %976 = vmatpush2.bf16.msra.mxu0 0
        %977 = vmatprep.subr.bf16.mxu0 0
        %978 = vmatpush2.bf16.msra.mxu0 0
        %979 = vmatprep.subr.bf16.mxu0 0
        %980 = vmatpush2.bf16.msra.mxu0 0
        %981 = vmatprep.mubr.bf16.mxu0 0
        %982 = vmatmul.mubr.bf16.gmra.mxu0 %v947
        %v983 = vpop.f32.mrf.mxu0
        %v984 = vadd.f32 0.0, %v983
        %v985 = vpop.f32.mrf.mxu0
        %v986 = vpop.f32.mrf.mxu0
        %v987 = vpop.f32.mrf.mxu0
        %988 = vdwg.mxu0
        %v989 = vmul.f32 %v675, %v839
        %v990 = vpack.c.bf16 %v675, %v675
        %v991 = vld [vmem:[#allocation2] sm:$0xff]
        %v992 = vpack.c.bf16 %v991, %v991
        %v993 = vmul.f32 %v989, %v984
        %v994 = vpack.c.bf16 %v993, %v993
        %996 = vrot.lane.b32.xlu0 %v990, 96
        %v997 = vpop.permute.xlu0 %996
        %999 = vxpose.xlu0.c.b16.start [1/8] %v997, 128
        %1000 = vxpose.xlu0.c.b16.cont [2/8] 0, 128
        %1001 = vxpose.xlu0.c.b16.cont [3/8] 0, 128
        %1002 = vxpose.xlu0.c.b16.cont [4/8] 0, 128
        %1003 = vxpose.xlu0.c.b16.cont [5/8] 0, 128
        %1004 = vxpose.xlu0.c.b16.cont [6/8] 0, 128
        %1005 = vxpose.xlu0.c.b16.cont [7/8] 0, 128
        %1006 = vxpose.xlu0.c.b16.end [8/8] 0, 128
        %v1007 = vpop.trf.xlu0
        %v1008 = vpop.trf.xlu0
        %v1009 = vpop.trf.xlu0
        %v1010 = vpop.trf.xlu0
        %v1011 = vpop.trf.xlu0
        %v1012 = vpop.trf.xlu0
        %v1013 = vpop.trf.xlu0
        %v1014 = vpop.trf.xlu0
        %v1016 = vsel %vm717, %v1007, 0
        %vm1018 = vcmask 1043456
        %v1020 = vsel %vm1018, %v994, 0
        %1022 = vmatprep.subr.bf16.mxu0 0
        %1023 = vmatpush1.bf16.msra.mxu0 0
        %1024 = vmatprep.subr.bf16.mxu0 0
        %1025 = vmatpush1.bf16.msra.mxu0 0
        %1026 = vmatprep.subr.bf16.mxu0 0
        %1027 = vmatpush1.bf16.msra.mxu0 0
        %1028 = vmatprep.subr.bf16.mxu0 0
        %1029 = vmatpush1.bf16.msra.mxu0 0
        %1030 = vmatprep.subr.bf16.mxu0 0
        %1031 = vmatpush1.bf16.msra.mxu0 0
        %1032 = vmatprep.subr.bf16.mxu0 0
        %1033 = vmatpush1.bf16.msra.mxu0 0
        %1034 = vmatprep.subr.bf16.mxu0 0
        %1035 = vmatpush1.bf16.msra.mxu0 0
        %1036 = vmatprep.subr.bf16.mxu0 0
        %1037 = vmatpush1.bf16.msra.mxu0 %v1020
        %1038 = vmatprep.subr.bf16.mxu0 0
        %1039 = vmatpush2.bf16.msra.mxu0 0
        %1040 = vmatprep.subr.bf16.mxu0 0
        %1041 = vmatpush2.bf16.msra.mxu0 0
        %1042 = vmatprep.subr.bf16.mxu0 0
        %1043 = vmatpush2.bf16.msra.mxu0 0
        %1044 = vmatprep.subr.bf16.mxu0 0
        %1045 = vmatpush2.bf16.msra.mxu0 0
        %1046 = vmatprep.subr.bf16.mxu0 0
        %1047 = vmatpush2.bf16.msra.mxu0 0
        %1048 = vmatprep.subr.bf16.mxu0 0
        %1049 = vmatpush2.bf16.msra.mxu0 0
        %1050 = vmatprep.subr.bf16.mxu0 0
        %1051 = vmatpush2.bf16.msra.mxu0 0
        %1052 = vmatprep.subr.bf16.mxu0 0
        %1053 = vmatpush2.bf16.msra.mxu0 0
        %1054 = vmatprep.mubr.bf16.mxu0 0
        %1055 = vmatmul.mubr.bf16.gmra.mxu0 %v1016
        %v1056 = vpop.f32.mrf.mxu0
        %v1057 = vadd.f32 0.0, %v1056
        %v1058 = vpop.f32.mrf.mxu0
        %v1059 = vpop.f32.mrf.mxu0
        %v1060 = vpop.f32.mrf.mxu0
        %1061 = vdwg.mxu0
        %v1062 = vlaneseq
        %v1063 = vshrl.u32 %v1062, 7
        %v1064 = vsub.s32 7, %v1063
        %v1065 = vrot.slane %v885, %v1064
        %v1066 = vmul.f32 %v1065, %v991
        %v1067 = vadd.f32 %v1066, %v1057
        %vm1068 = vcmask 261120
        %1069 = vst.msk [vmem:[#allocation2] sm:$0xff] %vm1068, %v1067
        %1070 = vrot.lane.b32.xlu0 %v990, 88
        %v1071 = vpop.permute.xlu0 %1070
        %v1073 = vsel %vm717, %v1071, 0
        %v1076 = vsel %vm717, %v997, 0
        %1078 = vmatprep.subr.bf16.mxu0 0
        %1079 = vmatpush1.bf16.xpose.msra.mxu0 0
        %1080 = vmatprep.subr.bf16.mxu0 0
        %1081 = vmatpush1.bf16.xpose.msra.mxu0 0
        %1082 = vmatprep.subr.bf16.mxu0 0
        %1083 = vmatpush1.bf16.xpose.msra.mxu0 0
        %1084 = vmatprep.subr.bf16.mxu0 0
        %1085 = vmatpush1.bf16.xpose.msra.mxu0 0
        %1086 = vmatprep.subr.bf16.mxu0 0
        %1087 = vmatpush1.bf16.xpose.msra.mxu0 0
        %1088 = vmatprep.subr.bf16.mxu0 0
        %1089 = vmatpush1.bf16.xpose.msra.mxu0 0
        %1090 = vmatprep.subr.bf16.mxu0 0
        %1091 = vmatpush1.bf16.xpose.msra.mxu0 0
        %1092 = vmatprep.subr.bf16.mxu0 0
        %1093 = vmatpush1.bf16.xpose.msra.mxu0 %v1076
        %1094 = vmatprep.subr.bf16.mxu0 0
        %1095 = vmatpush2.bf16.xpose.msra.mxu0 0
        %1096 = vmatprep.subr.bf16.mxu0 0
        %1097 = vmatpush2.bf16.xpose.msra.mxu0 0
        %1098 = vmatprep.subr.bf16.mxu0 0
        %1099 = vmatpush2.bf16.xpose.msra.mxu0 0
        %1100 = vmatprep.subr.bf16.mxu0 0
        %1101 = vmatpush2.bf16.xpose.msra.mxu0 0
        %1102 = vmatprep.subr.bf16.mxu0 0
        %1103 = vmatpush2.bf16.xpose.msra.mxu0 0
        %1104 = vmatprep.subr.bf16.mxu0 0
        %1105 = vmatpush2.bf16.xpose.msra.mxu0 0
        %1106 = vmatprep.subr.bf16.mxu0 0
        %1107 = vmatpush2.bf16.xpose.msra.mxu0 0
        %1108 = vmatprep.subr.bf16.mxu0 0
        %1109 = vmatpush2.bf16.xpose.msra.mxu0 0
        %1110 = vmatprep.mubr.bf16.mxu0 0
        %1111 = vmatmul.mubr.bf16.gmra.mxu0 %v1073
        %v1112 = vpop.f32.mrf.mxu0
        %v1113 = vadd.f32 0.0, %v1112
        %v1114 = vpop.f32.mrf.mxu0
        %v1115 = vpop.f32.mrf.mxu0
        %v1116 = vpop.f32.mrf.mxu0
        %1117 = vdwg.mxu0
        %v1118 = vmul.f32 %v1113, %v716
        %v1119 = vpack.c.bf16 %v1118, %v1118
        %v1120 = vmul.f32 %v989, %v933
        %v1121 = vpack.c.bf16 %v1120, %v1120
        %v1123 = vsel %vm717, %v1119, 0
        %v1126 = vsel %vm1018, %v1121, 0
        %1128 = vmatprep.subr.bf16.mxu0 0
        %1129 = vmatpush1.bf16.msra.mxu0 0
        %1130 = vmatprep.subr.bf16.mxu0 0
        %1131 = vmatpush1.bf16.msra.mxu0 0
        %1132 = vmatprep.subr.bf16.mxu0 0
        %1133 = vmatpush1.bf16.msra.mxu0 0
        %1134 = vmatprep.subr.bf16.mxu0 0
        %1135 = vmatpush1.bf16.msra.mxu0 0
        %1136 = vmatprep.subr.bf16.mxu0 0
        %1137 = vmatpush1.bf16.msra.mxu0 0
        %1138 = vmatprep.subr.bf16.mxu0 0
        %1139 = vmatpush1.bf16.msra.mxu0 0
        %1140 = vmatprep.subr.bf16.mxu0 0
        %1141 = vmatpush1.bf16.msra.mxu0 0
        %1142 = vmatprep.subr.bf16.mxu0 0
        %1143 = vmatpush1.bf16.msra.mxu0 %v1126
        %1144 = vmatprep.subr.bf16.mxu0 0
        %1145 = vmatpush2.bf16.msra.mxu0 0
        %1146 = vmatprep.subr.bf16.mxu0 0
        %1147 = vmatpush2.bf16.msra.mxu0 0
        %1148 = vmatprep.subr.bf16.mxu0 0
        %1149 = vmatpush2.bf16.msra.mxu0 0
        %1150 = vmatprep.subr.bf16.mxu0 0
        %1151 = vmatpush2.bf16.msra.mxu0 0
        %1152 = vmatprep.subr.bf16.mxu0 0
        %1153 = vmatpush2.bf16.msra.mxu0 0
        %1154 = vmatprep.subr.bf16.mxu0 0
        %1155 = vmatpush2.bf16.msra.mxu0 0
        %1156 = vmatprep.subr.bf16.mxu0 0
        %1157 = vmatpush2.bf16.msra.mxu0 0
        %1158 = vmatprep.subr.bf16.mxu0 0
        %1159 = vmatpush2.bf16.msra.mxu0 0
        %1160 = vmatprep.mubr.bf16.mxu0 0
        %1161 = vmatmul.mubr.bf16.gmra.mxu0 %v1123
        %v1162 = vpop.f32.mrf.mxu0
        %v1163 = vadd.f32 0.0, %v1162
        %v1164 = vpop.f32.mrf.mxu0
        %v1165 = vpop.f32.mrf.mxu0
        %v1166 = vpop.f32.mrf.mxu0
        %1167 = vdwg.mxu0
        %v1169 = vsel %vm1018, %v992, 0
        %1171 = vmatprep.subr.bf16.mxu0 0
        %1172 = vmatpush1.bf16.msra.mxu0 0
        %1173 = vmatprep.subr.bf16.mxu0 0
        %1174 = vmatpush1.bf16.msra.mxu0 0
        %1175 = vmatprep.subr.bf16.mxu0 0
        %1176 = vmatpush1.bf16.msra.mxu0 0
        %1177 = vmatprep.subr.bf16.mxu0 0
        %1178 = vmatpush1.bf16.msra.mxu0 0
        %1179 = vmatprep.subr.bf16.mxu0 0
        %1180 = vmatpush1.bf16.msra.mxu0 0
        %1181 = vmatprep.subr.bf16.mxu0 0
        %1182 = vmatpush1.bf16.msra.mxu0 0
        %1183 = vmatprep.subr.bf16.mxu0 0
        %1184 = vmatpush1.bf16.msra.mxu0 0
        %1185 = vmatprep.subr.bf16.mxu0 0
        %1186 = vmatpush1.bf16.msra.mxu0 %v1169
        %1187 = vmatprep.subr.bf16.mxu0 0
        %1188 = vmatpush2.bf16.msra.mxu0 0
        %1189 = vmatprep.subr.bf16.mxu0 0
        %1190 = vmatpush2.bf16.msra.mxu0 0
        %1191 = vmatprep.subr.bf16.mxu0 0
        %1192 = vmatpush2.bf16.msra.mxu0 0
        %1193 = vmatprep.subr.bf16.mxu0 0
        %1194 = vmatpush2.bf16.msra.mxu0 0
        %1195 = vmatprep.subr.bf16.mxu0 0
        %1196 = vmatpush2.bf16.msra.mxu0 0
        %1197 = vmatprep.subr.bf16.mxu0 0
        %1198 = vmatpush2.bf16.msra.mxu0 0
        %1199 = vmatprep.subr.bf16.mxu0 0
        %1200 = vmatpush2.bf16.msra.mxu0 0
        %1201 = vmatprep.subr.bf16.mxu0 0
        %1202 = vmatpush2.bf16.msra.mxu0 0
        %1203 = vmatprep.mubr.bf16.mxu0 0
        %1204 = vmatmul.mubr.bf16.gmra.mxu0 %v1073
        %v1205 = vpop.f32.mrf.mxu0
        %v1206 = vadd.f32 %v1163, %v1205
        %v1207 = vpop.f32.mrf.mxu0
        %v1208 = vpop.f32.mrf.mxu0
        %v1209 = vpop.f32.mrf.mxu0
        %1210 = vdwg.mxu0
        %v1211 = vmul.f32 %v1206, %v885
        %v1212 = vsub.f32 0.0, %v567
        %v1213 = vmul.f32 %v1212, 1.442695
        %v1214 = vpow.pop %v1213
        %v1215 = vadd.f32 %v1214, 1.0
        %v1216 = vrcp.pop %v1215
        %v1217 = vmul.f32 %v567, %v1216
        %v1218 = vmul.f32 %v1211, %v1217
        %v1219 = vsel %vm1068, %v1218, 0.0
        %1220 = vadd.xlane.f32.xlu0 %v1219
        %v1221 = vpop.xlane.xlu0 %1220
        %v1222 = vrcp.pop 32.0
        %v1223 = vmul.f32 %v1221, %v1222
        %v1224 = vsub.f32 %v1218, %v1223
        %v1225 = vmul.f32 %v1224, %v1224
        %v1226 = vsel %vm1068, %v1225, 0.0
        %1227 = vadd.xlane.f32.xlu0 %v1226
        %v1228 = vpop.xlane.xlu0 %1227
        %v1229 = vmul.f32 %v1228, %v1222
        %v1230 = vadd.f32 %v1229, 1e-05
        %v1231 = vrsqrt.pop %v1230
        %v1232 = vmul.f32 %v1224, %v1231
        %v1233 = vld [vmem:[%s10] sm:$0x1]
        %v1235 = vlaneseq
        %v1236 = vshrl.u32 %v1235, 7
        %v1237 = vsub.s32 0, %v1236
        %v1238 = vrot.slane %v1233, %v1237
        %v1240 = vmul.f32 %v1232, %v1238
        %v1241 = vld [vmem:[%s11] sm:$0x1]
        %v1243 = vlaneseq
        %v1244 = vshrl.u32 %v1243, 7
        %v1245 = vsub.s32 0, %v1244
        %v1246 = vrot.slane %v1241, %v1245
        %v1248 = vadd.f32 %v1240, %v1246
        %v1249 = vpack.c.bf16 %v1248, %v1248
        %v1250 = vld [vmem:[%s12] sm:$0xf]
        %v1251 = vld [vmem:[%s12 + $0x4] sm:$0xf]
        %v1252 = vld [vmem:[%s12 + $0x8] sm:$0xf]
        %v1253 = vld [vmem:[%s12 + $0xc] sm:$0xf]
        %v1254 = vld [vmem:[%s13] sm:$0x1]
        %v1256 = vlaneseq
        %v1257 = vshrl.u32 %v1256, 7
        %v1258 = vsub.s32 0, %v1257
        %v1259 = vrot.slane %v1254, %v1258
        %v1265 = vunpack.c.l.b16 %v1250
        %v1266 = vunpack.c.l.b16 %v1251
        %v1267 = vunpack.c.l.b16 %v1252
        %v1268 = vunpack.c.l.b16 %v1253
        %v1269 = vpack.c.b16 %v1266, %v1265
        %v1270 = vpack.c.b16 %v1268, %v1267
        %v1274 = vsel %vm1068, %v1249, 0
        %1276 = vmatprep.subr.bf16.mxu0 0
        %1277 = vmatpush1.bf16.msra.mxu0 0
        %1278 = vmatprep.subr.bf16.mxu0 0
        %1279 = vmatpush1.bf16.msra.mxu0 0
        %1280 = vmatprep.subr.bf16.mxu0 0
        %1281 = vmatpush1.bf16.msra.mxu0 0
        %1282 = vmatprep.subr.bf16.mxu0 0
        %1283 = vmatpush1.bf16.msra.mxu0 0
        %1284 = vmatprep.subr.bf16.mxu0 0
        %1285 = vmatpush1.bf16.msra.mxu0 0
        %1286 = vmatprep.subr.bf16.mxu0 0
        %1287 = vmatpush1.bf16.msra.mxu0 0
        %1288 = vmatprep.subr.bf16.mxu0 0
        %1289 = vmatpush1.bf16.msra.mxu0 %v1270
        %1290 = vmatprep.subr.bf16.mxu0 0
        %1291 = vmatpush1.bf16.msra.mxu0 %v1269
        %1292 = vmatprep.subr.bf16.mxu0 0
        %1293 = vmatpush2.bf16.msra.mxu0 0
        %1294 = vmatprep.subr.bf16.mxu0 0
        %1295 = vmatpush2.bf16.msra.mxu0 0
        %1296 = vmatprep.subr.bf16.mxu0 0
        %1297 = vmatpush2.bf16.msra.mxu0 0
        %1298 = vmatprep.subr.bf16.mxu0 0
        %1299 = vmatpush2.bf16.msra.mxu0 0
        %1300 = vmatprep.subr.bf16.mxu0 0
        %1301 = vmatpush2.bf16.msra.mxu0 0
        %1302 = vmatprep.subr.bf16.mxu0 0
        %1303 = vmatpush2.bf16.msra.mxu0 0
        %1304 = vmatprep.subr.bf16.mxu0 0
        %1305 = vmatpush2.bf16.msra.mxu0 0
        %1306 = vmatprep.subr.bf16.mxu0 0
        %1307 = vmatpush2.bf16.msra.mxu0 0
        %1308 = vmatprep.mubr.bf16.mxu0 0
        %1309 = vmatmul.mubr.bf16.gmra.mxu0 %v1274
        %v1310 = vpop.f32.mrf.mxu0
        %v1311 = vadd.f32 %v1259, %v1310
        %v1312 = vpop.f32.mrf.mxu0
        %v1313 = vpop.f32.mrf.mxu0
        %v1314 = vpop.f32.mrf.mxu0
        %1315 = vdwg.mxu0
        %1316 = vst.msk [vmem:[%s500] sm:$0xff] %vm528, %v1311
        %s1317 = sand.u32 %s354, 1
        %s1318 = scalar_lea.sflag [#allocation6], %s1317
        %s1319 = sand.u32 %s354, 1
        %s1320 = smul.addr %s1319, 8
        %s1321 = scalar_lea.vmem [#allocation7], %s1320
        // Predicated region
        $region85: #{tpu_custom_call.1} parent=75 // pred_check
          %p1322 = pneg %p364
        $region86: #{tpu_custom_call.1} parent=75 // pred_check_branch
          %1324 = sbr.rel (%p1322) target = $region88
        $region87: #{tpu_custom_call.1} parent=75 // pred_region
          %s1326 = ssub.s32 128, 128
          %1327 = vsyncadd %s1318, %s1326
          %s1328 = smul.addr %s35, 2
          %s1329 = sadd.s32 %s36, %s1328
          %s1330 = smul.addr %s1329, 128
          %s1331 = scalar_lea.hbm %s14, %s1330
          %s1333 = sshll.u32 %s1321, 4
          %s1334 = int_to_ptr.vmem [resolvable:$true] %s1333
          %1336 = dma.vmem_to_hbm [thread:$0]  %s1334, 128, %s1331, %s1318
        $region88: #{tpu_custom_call.1} parent=75 // pred_fallthru
          _
      $region76: #{tpu_custom_call.1} parent=5 // pred_fallthru
        _
      %p1337 = scmp.le.s32.totalorder 2, %s26
      // Predicated region
      $region89: #{tpu_custom_call.1} parent=5 // pred_check
        %p1338 = pneg %p1337
      $region90: #{tpu_custom_call.1} parent=5 // pred_check_branch
        %1340 = sbr.rel (%p1338) target = $region92
      $region91: #{tpu_custom_call.1} parent=5 // pred_region
        %s1341 = ssub.s32 %s26, 2
        // Predicated region
        $region93: #{tpu_custom_call.1} parent=91 // pred_check
          %p1342 = pneg %p370
        $region94: #{tpu_custom_call.1} parent=91 // pred_check_branch
          %1344 = sbr.rel (%p1342) target = $region96
        $region95: #{tpu_custom_call.1} parent=91 // pred_region
          %s1345 = sand.u32 %s355, 1
          %s1346 = scalar_lea.sflag [#allocation6], %s1345
          %s1347 = sand.u32 %s355, 1
          %s1348 = smul.addr %s1347, 8
          %s1349 = scalar_lea.vmem [#allocation7], %s1348
          %1350 = dma.done %s1346, 128
        $region96: #{tpu_custom_call.1} parent=91 // pred_fallthru
          _
      $region92: #{tpu_custom_call.1} parent=5 // pred_fallthru
        _
    $region6: #{tpu_custom_call.1} parent=1 // loop_footer
      %s30 = sadd.s32 1, %s26
    $region7: #{tpu_custom_call.1} parent=1 // loop_footer_branch
      %25 = sbr.rel target = $region3
    $region8: #{tpu_custom_call.1} parent=1 // loop_exit
      _
    %1351 = vsyncpa [#allocation5], 1
    %s1352 = scalar_lea.sflag [#allocation5], 1
    %1353 = vsyncpa %s1352, 1
    %1354 = vsyncpa [#allocation6], 1
    %s1355 = scalar_lea.sflag [#allocation6], 1
    %1356 = vsyncpa %s1355, 1

</llo_original>
